<compile_context>
chip_gen: v5e
topology: v5e:2x2
jax: 0.10.0
libtpu: 0.0.40
codegen_flags: <defaults>
</compile_context>

<pallas_src>
import math
import functools

import jax
import jax.numpy as jnp
from jax.experimental import pallas as pl
from jax.experimental.pallas import tpu as pltpu


# --------------------------------------------------------------------------- helpers
def _layer_norm(z, g, b, eps=1e-5):
    mu = jnp.mean(z, axis=-1, keepdims=True)
    zc = z - mu
    var = jnp.mean(zc * zc, axis=-1, keepdims=True)
    return zc * jax.lax.rsqrt(var + eps) * g + b


def _gelu_tanh(z):
    # GPT-2 "gelu_new"; tanh goes to the (otherwise idle) EUP slot.
    return 0.5 * z * (1.0 + jnp.tanh(0.7978845608028654 * (z + 0.044715 * z * z * z)))


# --------------------------------------------------------------- fused transformer kernel
def _meta_transformer_kernel(ids_ref, xext_ref, pos_ref, bias_ref,
                             ln1g_ref, ln1b_ref, wqkv_ref, bqkv_ref, wo_ref, bo_ref,
                             ln2g_ref, ln2b_ref, wfc_ref, bfc_ref, wproj_ref, bproj_ref,
                             lnfg_ref, lnfb_ref,
                             o_ref, *, n_head):
    """Grid = (batch, layer). The hidden state lives in the (revisited) output block."""
    layer = pl.program_id(1)
    n_layer = pl.num_programs(1)

    # ---- layer 0: fused embedding gather (dense one-hot @ x_ext on the MXU) + pos-emb
    @pl.when(layer == 0)
    def _():
        ids = ids_ref[0]                                        # (L, 1) int32
        L = ids.shape[0]
        n_rows = xext_ref.shape[0]
        eq = jax.lax.broadcasted_iota(jnp.int32, (L, n_rows), 1) == ids
        onehot = jnp.where(eq, 1.0, 0.0)                        # (L, n_rows) f32
        o_ref[0] = jnp.dot(onehot, xext_ref[...],
                           preferred_element_type=jnp.float32) + pos_ref[...]

    h = o_ref[0]                                                # (L, D) f32, VMEM-resident
    L, D = h.shape
    E = D // n_head

    # ---------------- attention sub-block (pre-LN) ----------------
    a = _layer_norm(h, ln1g_ref[0], ln1b_ref[0])
    # all heads + q/k/v in ONE bf16 MXU matmul, f32 accumulation;
    # the 1/sqrt(E) attention scale is already folded into the Q columns host-side.
    qkv = jnp.dot(a.astype(jnp.bfloat16), wqkv_ref[0],
                  preferred_element_type=jnp.float32) + bqkv_ref[0]        # (L, 3D)
    bias = bias_ref[0]                                          # (L, L) additive 0 / -1e30

    ctx_heads = []
    for hh in range(n_head):
        q = qkv[:, hh * E:(hh + 1) * E]                         # (L, E)
        k = qkv[:, D + hh * E:D + (hh + 1) * E]                 # (L, E)
        v = qkv[:, 2 * D + hh * E:2 * D + (hh + 1) * E]         # (L, E)
        s = jax.lax.dot_general(q, k, (((1,), (1,)), ((), ())),
                                preferred_element_type=jnp.float32) + bias  # (L, L)
        m = jnp.max(s, axis=-1, keepdims=True)
        p = jnp.exp(s - m)                                      # masked entries underflow to 0
        inv = pl.reciprocal(jnp.sum(p, axis=-1, keepdims=True), approx=True)
        ctx_heads.append(jnp.dot(p * inv, v, preferred_element_type=jnp.float32))
    ctx = jnp.concatenate(ctx_heads, axis=-1)                   # (L, D)
    h = h + (jnp.dot(ctx.astype(jnp.bfloat16), wo_ref[0],
                     preferred_element_type=jnp.float32) + bo_ref[0])

    # ---------------- MLP sub-block (pre-LN) ----------------
    a2 = _layer_norm(h, ln2g_ref[0], ln2b_ref[0])
    ff = jnp.dot(a2.astype(jnp.bfloat16), wfc_ref[0],
                 preferred_element_type=jnp.float32) + bfc_ref[0]
    ff = _gelu_tanh(ff)
    h = h + (jnp.dot(ff.astype(jnp.bfloat16), wproj_ref[0],
                     preferred_element_type=jnp.float32) + bproj_ref[0])

    o_ref[0] = h

    # ---- final ln_f after the last layer (hidden never round-trips through HBM)
    @pl.when(layer == n_layer - 1)
    def _():
        o_ref[0] = _layer_norm(o_ref[0], lnfg_ref[...], lnfb_ref[...])


def transformer_stack(ids_col, x_ext, pos_emb, attn_bias, p, *, n_head):
    B, L, _ = ids_col.shape
    D = x_ext.shape[1]
    n_layer = p["wqkv"].shape[0]

    def b_spec(a):      # per-batch block, constant across the layer axis (stays resident)
        nd = a.ndim
        return pl.BlockSpec((1,) + a.shape[1:], lambda b, l, _nd=nd: (b,) + (0,) * (_nd - 1))

    def l_spec(a):      # per-layer stacked weights
        nd = a.ndim
        return pl.BlockSpec((1,) + a.shape[1:], lambda b, l, _nd=nd: (l,) + (0,) * (_nd - 1))

    def f_spec(a):      # full, grid-invariant array
        nd = a.ndim
        return pl.BlockSpec(a.shape, lambda b, l, _nd=nd: (0,) * _nd)

    layer_args = (p["ln1_g"], p["ln1_b"], p["wqkv"], p["bqkv"], p["wo"], p["bo"],
                  p["ln2_g"], p["ln2_b"], p["wfc"], p["bfc"], p["wproj"], p["bproj"])
    args = (ids_col, x_ext, pos_emb, attn_bias) + layer_args + (p["lnf_g"], p["lnf_b"])
    in_specs = ([b_spec(ids_col), f_spec(x_ext), f_spec(pos_emb), b_spec(attn_bias)]
                + [l_spec(a) for a in layer_args]
                + [f_spec(p["lnf_g"]), f_spec(p["lnf_b"])])

    return pl.pallas_call(
        functools.partial(_meta_transformer_kernel, n_head=n_head),
        out_shape=jax.ShapeDtypeStruct((B, L, D), jnp.float32),
        grid=(B, n_layer),
        in_specs=in_specs,
        out_specs=pl.BlockSpec((1, L, D), lambda b, l: (b, 0, 0)),
        compiler_params=pltpu.CompilerParams(
            dimension_semantics=("parallel", "arbitrary"),   # batch shards across TCs (v7x)
            vmem_limit_bytes=64 * 1024 * 1024),
    )(*args)


# --------------------------------------------------------------- scatter_mean kernel
def _scatter_mean_kernel(ids_ref, h_ref, o_ref):
    """scatter_mean as a dense one-hot MXU matmul: out[n] = mean_t{h[t] : ids[t]==n}."""
    ids = ids_ref[...]                                          # (1, T) int32
    n_rows = o_ref.shape[0]
    T = ids.shape[1]
    eq = jax.lax.broadcasted_iota(jnp.int32, (n_rows, T), 0) == ids
    onehot = jnp.where(eq, 1.0, 0.0)                            # (n_rows, T) f32
    sums = jnp.dot(onehot, h_ref[...], preferred_element_type=jnp.float32)   # (n_rows, D)
    counts = jnp.sum(onehot, axis=-1, keepdims=True)            # (n_rows, 1)
    o_ref[...] = sums / jnp.maximum(counts, 1.0)                # empty bins -> 0 (scatter_mean)


def scatter_mean(ids_row, h_flat, n_rows):
    D = h_flat.shape[1]
    vmem = pl.BlockSpec(memory_space=pltpu.MemorySpace.VMEM)
    return pl.pallas_call(
        _scatter_mean_kernel,
        out_shape=jax.ShapeDtypeStruct((n_rows, D), jnp.float32),
        in_specs=[vmem, vmem],
        out_specs=vmem,
    )(ids_row, h_flat)


# --------------------------------------------------------------------------- wrapper
def meta_transformer_forward(params, x, input_seqs, query_seqs, *, n_head,
                             edge_index=None, edge_attr=None, query_mask=None,
                             start_right=None, query_seqs_gt=None, prev_hidden_states=None):
    # edge_index/edge_attr/query_mask/start_right/query_seqs_gt/prev_hidden_states are
    # accepted for interface parity but unused — exactly as in the PyTorch forward.
    del edge_index, edge_attr, query_mask, start_right, query_seqs_gt, prev_hidden_states

    N, D = x.shape
    # masked_token_emb row (zeros) appended to the node features
    x_ext = jnp.concatenate([x, jnp.zeros((1, D), x.dtype)], axis=0)        # (N+1, D)
    n_rows = ((N + 1 + 7) // 8) * 8                                         # sublane-align
    x_ext = jnp.pad(x_ext, ((0, n_rows - (N + 1)), (0, 0)))

    inputs_ids = jnp.concatenate([input_seqs, query_seqs], axis=1).astype(jnp.int32)  # (B, L)
    B, L = inputs_ids.shape
    L_in = input_seqs.shape[1]
    assert L % 2 == 0

    # attention_mask[:, L_in+1::2] = 0  (the ground-truth / masked-token slots)
    cols = jnp.arange(L)
    gt_cols = (cols >= L_in + 1) & (((cols - (L_in + 1)) % 2) == 0)
    attn_mask = jnp.where(gt_cols[None, :], 0.0, 1.0) * jnp.ones((B, 1), jnp.float32)

    # position ids 0,0,1,1,...  ->  learned position embeddings (shared across batch)
    position_ids = jnp.repeat(jnp.arange(L // 2, dtype=jnp.int32), 2)
    pos_emb = params["wpe"][position_ids]                                   # (L, D)

    # precomputed ADDITIVE attention bias (causal AND key-padding): 0 / -1e30
    causal = cols[None, :] <= cols[:, None]                                 # k <= q
    allowed = causal[None, :, :] & (attn_mask[:, None, :] > 0.5)
    attn_bias = jnp.where(allowed, 0.0, -1e30).astype(jnp.float32)          # (B, L, L)

    ids_col = inputs_ids[:, :, None]                                        # (B, L, 1)
    hidden = transformer_stack(ids_col, x_ext, pos_emb, attn_bias, params,
                               n_head=n_head)                               # (B, L, D)

    pooled = scatter_mean(inputs_ids.reshape(1, B * L),
                          hidden.reshape(B * L, D), n_rows)                 # (n_rows, D)
    return pooled[:N]                                                       # == scatter_mean(...)[:-1]


# ---------------------------------------------------------------------- params (GPT-2 style)
def init_params(key, *, n_layer, n_embd, n_head, n_positions, n_inner=None):
    D = n_embd
    F = n_inner if n_inner is not None else 4 * D
    E = D // n_head
    std = 0.02
    ks = jax.random.split(key, 5)

    def nrm(k, shape):
        return std * jax.random.normal(k, shape, jnp.float32)

    wqkv = nrm(ks[0], (n_layer, D, 3 * D))
    bqkv = jnp.zeros((n_layer, 1, 3 * D), jnp.float32)
    # fold the 1/sqrt(head_dim) attention scale into the Q projection (host side)
    qscale = jnp.concatenate([jnp.full((D,), 1.0 / math.sqrt(E), jnp.float32),
                              jnp.ones((2 * D,), jnp.float32)])
    wqkv = wqkv * qscale[None, None, :]
    bqkv = bqkv * qscale[None, None, :]

    return dict(
        wpe=nrm(ks[1], (n_positions, D)),
        ln1_g=jnp.ones((n_layer, 1, D), jnp.float32),
        ln1_b=jnp.zeros((n_layer, 1, D), jnp.float32),
        wqkv=wqkv.astype(jnp.bfloat16), bqkv=bqkv,
        wo=nrm(ks[2], (n_layer, D, D)).astype(jnp.bfloat16),
        bo=jnp.zeros((n_layer, 1, D), jnp.float32),
        ln2_g=jnp.ones((n_layer, 1, D), jnp.float32),
        ln2_b=jnp.zeros((n_layer, 1, D), jnp.float32),
        wfc=nrm(ks[3], (n_layer, D, F)).astype(jnp.bfloat16),
        bfc=jnp.zeros((n_layer, 1, F), jnp.float32),
        wproj=nrm(ks[4], (n_layer, F, D)).astype(jnp.bfloat16),
        bproj=jnp.zeros((n_layer, 1, D), jnp.float32),
        lnf_g=jnp.ones((1, D), jnp.float32),
        lnf_b=jnp.zeros((1, D), jnp.float32),
    )


if __name__ == "__main__":
    key = jax.random.PRNGKey(0)
    kx, kp, ki, kq = jax.random.split(key, 4)

    N_NODES, N_EMBD, N_HEAD, N_LAYER = 10, 128, 4, 2
    B, L_IN, N_QUERY = 2, 8, 4
    MASKED_ID = N_NODES                       # index of the appended masked-token row

    x = jax.random.normal(kx, (N_NODES, N_EMBD), jnp.float32)
    params = init_params(kp, n_layer=N_LAYER, n_embd=N_EMBD, n_head=N_HEAD,
                         n_positions=(L_IN + 2 * N_QUERY) // 2)

    input_seqs = jax.random.randint(ki, (B, L_IN), 0, N_NODES, dtype=jnp.int32)
    q_nodes = jax.random.randint(kq, (B, N_QUERY), 0, N_NODES, dtype=jnp.int32)
    # query half interleaves [query node, masked token]; the masked-token (GT) slots are
    # exactly the positions the PyTorch forward zeroes in attention_mask (L_in+1::2).
    query_seqs = jnp.stack([q_nodes, jnp.full_like(q_nodes, MASKED_ID)],
                           axis=-1).reshape(B, 2 * N_QUERY)

    out = meta_transformer_forward(params, x, input_seqs, query_seqs, n_head=N_HEAD)
    out = jax.block_until_ready(out)
    assert out.shape == (N_NODES, N_EMBD) and out.dtype == jnp.float32
    assert bool(jnp.all(jnp.isfinite(out)))
    print("KERNEL_OK")
</pallas_src>

<mosaic_0001>
module attributes {stable_mosaic.version = 11 : i64} {
  func.func @_meta_transformer_kernel(%arg0: i32, %arg1: i32, %arg2: memref<1x16x1xi32, #tpu.memory_space<vmem>>, %arg3: memref<16x128xf32, #tpu.memory_space<vmem>>, %arg4: memref<16x128xf32, #tpu.memory_space<vmem>>, %arg5: memref<1x16x16xf32, #tpu.memory_space<vmem>>, %arg6: memref<1x1x128xf32, #tpu.memory_space<vmem>>, %arg7: memref<1x1x128xf32, #tpu.memory_space<vmem>>, %arg8: memref<1x128x384xbf16, #tpu.memory_space<vmem>>, %arg9: memref<1x1x384xf32, #tpu.memory_space<vmem>>, %arg10: memref<1x128x128xbf16, #tpu.memory_space<vmem>>, %arg11: memref<1x1x128xf32, #tpu.memory_space<vmem>>, %arg12: memref<1x1x128xf32, #tpu.memory_space<vmem>>, %arg13: memref<1x1x128xf32, #tpu.memory_space<vmem>>, %arg14: memref<1x128x512xbf16, #tpu.memory_space<vmem>>, %arg15: memref<1x1x512xf32, #tpu.memory_space<vmem>>, %arg16: memref<1x512x128xbf16, #tpu.memory_space<vmem>>, %arg17: memref<1x1x128xf32, #tpu.memory_space<vmem>>, %arg18: memref<1x128xf32, #tpu.memory_space<vmem>>, %arg19: memref<1x128xf32, #tpu.memory_space<vmem>>, %arg20: memref<1x16x128xf32, #tpu.memory_space<vmem>>) attributes {dimension_semantics = [#tpu.dimension_semantics<parallel>, #tpu.dimension_semantics<arbitrary>], iteration_bounds = array<i64: 2, 2>, scalar_prefetch = 0 : i64, scratch_operands = 0 : i64, tpu.core_type = #tpu.core_type<tc>, window_params = [{transform_indices = @transform_0, window_bounds = array<i64: 1, 16, 1>}, {pipeline_mode = #tpu.pipeline_mode<synchronous>, transform_indices = @transform_1, window_bounds = array<i64: 16, 128>}, {pipeline_mode = #tpu.pipeline_mode<synchronous>, transform_indices = @transform_2, window_bounds = array<i64: 16, 128>}, {transform_indices = @transform_3, window_bounds = array<i64: 1, 16, 16>}, {transform_indices = @transform_4, window_bounds = array<i64: 1, 1, 128>}, {transform_indices = @transform_5, window_bounds = array<i64: 1, 1, 128>}, {transform_indices = @transform_6, window_bounds = array<i64: 1, 128, 384>}, {transform_indices = @transform_7, window_bounds = array<i64: 1, 1, 384>}, {transform_indices = @transform_8, window_bounds = array<i64: 1, 128, 128>}, {transform_indices = @transform_9, window_bounds = array<i64: 1, 1, 128>}, {transform_indices = @transform_10, window_bounds = array<i64: 1, 1, 128>}, {transform_indices = @transform_11, window_bounds = array<i64: 1, 1, 128>}, {transform_indices = @transform_12, window_bounds = array<i64: 1, 128, 512>}, {transform_indices = @transform_13, window_bounds = array<i64: 1, 1, 512>}, {transform_indices = @transform_14, window_bounds = array<i64: 1, 512, 128>}, {transform_indices = @transform_15, window_bounds = array<i64: 1, 1, 128>}, {pipeline_mode = #tpu.pipeline_mode<synchronous>, transform_indices = @transform_16, window_bounds = array<i64: 1, 128>}, {pipeline_mode = #tpu.pipeline_mode<synchronous>, transform_indices = @transform_17, window_bounds = array<i64: 1, 128>}, {transform_indices = @transform_18, window_bounds = array<i64: 1, 16, 128>}]} {
    %c0_i32 = arith.constant 0 : i32
    %0 = arith.cmpi eq, %arg1, %c0_i32 : i32
    %1 = arith.extui %0 : i1 to i32
    %c0_i32_0 = arith.constant 0 : i32
    %2 = arith.cmpi ne, %1, %c0_i32_0 : i32
    scf.if %2 {
      %c0_79 = arith.constant 0 : index
      %c0_80 = arith.constant 0 : index
      %c0_81 = arith.constant 0 : index
      %173 = vector.load %arg2[%c0_79, %c0_80, %c0_81] : memref<1x16x1xi32, #tpu.memory_space<vmem>>, vector<1x16x1xi32>
      %174 = vector.shape_cast %173 : vector<1x16x1xi32> to vector<16x1xi32>
      %175 = tpu.iota {dimensions = array<i32: 1>} : vector<16x16xi32>
      %176 = vector.broadcast %174 : vector<16x1xi32> to vector<16x16xi32>
      %177 = arith.cmpi eq, %175, %176 : vector<16x16xi32>
      %cst_82 = arith.constant 1.000000e+00 : f32
      %cst_83 = arith.constant 0.000000e+00 : f32
      %178 = vector.broadcast %cst_82 : f32 to vector<16x16xf32>
      %179 = vector.broadcast %cst_83 : f32 to vector<16x16xf32>
      %180 = arith.select %177, %178, %179 : vector<16x16xi1>, vector<16x16xf32>
      %c0_84 = arith.constant 0 : index
      %c0_85 = arith.constant 0 : index
      %181 = vector.load %arg3[%c0_84, %c0_85] : memref<16x128xf32, #tpu.memory_space<vmem>>, vector<16x128xf32>
      %cst_86 = arith.constant dense<0.000000e+00> : vector<16x128xf32>
      %182 = tpu.matmul %180, %181, %cst_86 {dimension_numbers = #tpu.dot_dimension_numbers<[1], [0], [0], [1], [0, 0, 1, 1], [], []>} : vector<16x16xf32>, vector<16x128xf32>, vector<16x128xf32> -> vector<16x128xf32>
      %c0_87 = arith.constant 0 : index
      %c0_88 = arith.constant 0 : index
      %183 = vector.load %arg4[%c0_87, %c0_88] : memref<16x128xf32, #tpu.memory_space<vmem>>, vector<16x128xf32>
      %184 = arith.addf %182, %183 : vector<16x128xf32>
      %c0_89 = arith.constant 0 : index
      %c0_90 = arith.constant 0 : index
      %c0_91 = arith.constant 0 : index
      %185 = vector.load %arg20[%c0_89, %c0_90, %c0_91] : memref<1x16x128xf32, #tpu.memory_space<vmem>>, vector<1x16x128xf32>
      %186 = vector.shape_cast %185 : vector<1x16x128xf32> to vector<16x128xf32>
      %187 = vector.shape_cast %184 : vector<16x128xf32> to vector<1x16x128xf32>
      tpu.vector_store %arg20[%c0_89, %c0_90, %c0_91], %187 {strides = array<i32>} : memref<1x16x128xf32, #tpu.memory_space<vmem>>, vector<1x16x128xf32>,
    } else {
    }
    %c0 = arith.constant 0 : index
    %c0_1 = arith.constant 0 : index
    %c0_2 = arith.constant 0 : index
    %3 = vector.load %arg20[%c0, %c0_1, %c0_2] : memref<1x16x128xf32, #tpu.memory_space<vmem>>, vector<1x16x128xf32>
    %4 = vector.shape_cast %3 : vector<1x16x128xf32> to vector<16x128xf32>
    %c0_3 = arith.constant 0 : index
    %c0_4 = arith.constant 0 : index
    %c0_5 = arith.constant 0 : index
    %5 = vector.load %arg6[%c0_3, %c0_4, %c0_5] : memref<1x1x128xf32, #tpu.memory_space<vmem>>, vector<1x1x128xf32>
    %6 = vector.shape_cast %5 : vector<1x1x128xf32> to vector<1x128xf32>
    %c0_6 = arith.constant 0 : index
    %c0_7 = arith.constant 0 : index
    %c0_8 = arith.constant 0 : index
    %7 = vector.load %arg7[%c0_6, %c0_7, %c0_8] : memref<1x1x128xf32, #tpu.memory_space<vmem>>, vector<1x1x128xf32>
    %8 = vector.shape_cast %7 : vector<1x1x128xf32> to vector<1x128xf32>
    %cst = arith.constant dense<0.000000e+00> : vector<16xf32>
    %9 = vector.multi_reduction <add>, %4, %cst [1] : vector<16x128xf32> to vector<16xf32>
    %10 = vector.shape_cast %9 : vector<16xf32> to vector<16x1xf32>
    %cst_9 = arith.constant 1.280000e+02 : f32
    %11 = vector.broadcast %cst_9 : f32 to vector<16x1xf32>
    %12 = arith.divf %10, %11 : vector<16x1xf32>
    %13 = vector.broadcast %12 : vector<16x1xf32> to vector<16x128xf32>
    %14 = arith.subf %4, %13 : vector<16x128xf32>
    %15 = arith.mulf %14, %14 : vector<16x128xf32>
    %cst_10 = arith.constant dense<0.000000e+00> : vector<16xf32>
    %16 = vector.multi_reduction <add>, %15, %cst_10 [1] : vector<16x128xf32> to vector<16xf32>
    %17 = vector.shape_cast %16 : vector<16xf32> to vector<16x1xf32>
    %cst_11 = arith.constant 1.280000e+02 : f32
    %18 = vector.broadcast %cst_11 : f32 to vector<16x1xf32>
    %19 = arith.divf %17, %18 : vector<16x1xf32>
    %cst_12 = arith.constant 9.99999974E-6 : f32
    %20 = vector.broadcast %cst_12 : f32 to vector<16x1xf32>
    %21 = arith.addf %19, %20 : vector<16x1xf32>
    %22 = math.rsqrt %21 : vector<16x1xf32>
    %23 = vector.broadcast %22 : vector<16x1xf32> to vector<16x128xf32>
    %24 = arith.mulf %14, %23 : vector<16x128xf32>
    %25 = vector.broadcast %6 : vector<1x128xf32> to vector<16x128xf32>
    %26 = arith.mulf %24, %25 : vector<16x128xf32>
    %27 = vector.broadcast %8 : vector<1x128xf32> to vector<16x128xf32>
    %28 = arith.addf %26, %27 : vector<16x128xf32>
    %29 = arith.truncf %28 : vector<16x128xf32> to vector<16x128xbf16>
    %c0_13 = arith.constant 0 : index
    %c0_14 = arith.constant 0 : index
    %c0_15 = arith.constant 0 : index
    %30 = vector.load %arg8[%c0_13, %c0_14, %c0_15] : memref<1x128x384xbf16, #tpu.memory_space<vmem>>, vector<1x128x384xbf16>
    %31 = vector.shape_cast %30 : vector<1x128x384xbf16> to vector<128x384xbf16>
    %cst_16 = arith.constant dense<0.000000e+00> : vector<16x384xf32>
    %32 = tpu.matmul %29, %31, %cst_16 {dimension_numbers = #tpu.dot_dimension_numbers<[1], [0], [0], [1], [0, 0, 1, 1], [], []>} : vector<16x128xbf16>, vector<128x384xbf16>, vector<16x384xf32> -> vector<16x384xf32>
    %c0_17 = arith.constant 0 : index
    %c0_18 = arith.constant 0 : index
    %c0_19 = arith.constant 0 : index
    %33 = vector.load %arg9[%c0_17, %c0_18, %c0_19] : memref<1x1x384xf32, #tpu.memory_space<vmem>>, vector<1x1x384xf32>
    %34 = vector.shape_cast %33 : vector<1x1x384xf32> to vector<1x384xf32>
    %35 = vector.broadcast %34 : vector<1x384xf32> to vector<16x384xf32>
    %36 = arith.addf %32, %35 : vector<16x384xf32>
    %c0_20 = arith.constant 0 : index
    %c0_21 = arith.constant 0 : index
    %c0_22 = arith.constant 0 : index
    %37 = vector.load %arg5[%c0_20, %c0_21, %c0_22] : memref<1x16x16xf32, #tpu.memory_space<vmem>>, vector<1x16x16xf32>
    %38 = vector.shape_cast %37 : vector<1x16x16xf32> to vector<16x16xf32>
    %39 = vector.extract_strided_slice %36 {offsets = [0, 0], sizes = [16, 32], strides = [1, 1]} : vector<16x384xf32> to vector<16x32xf32>
    %40 = vector.extract_strided_slice %36 {offsets = [0, 128], sizes = [16, 32], strides = [1, 1]} : vector<16x384xf32> to vector<16x32xf32>
    %41 = vector.extract_strided_slice %36 {offsets = [0, 256], sizes = [16, 32], strides = [1, 1]} : vector<16x384xf32> to vector<16x32xf32>
    %cst_23 = arith.constant dense<0.000000e+00> : vector<16x16xf32>
    %42 = tpu.matmul %39, %40, %cst_23 {dimension_numbers = #tpu.dot_dimension_numbers<[1], [1], [0], [0], [0, 0, 1, 0], [], []>} : vector<16x32xf32>, vector<16x32xf32>, vector<16x16xf32> -> vector<16x16xf32>
    %43 = arith.addf %42, %38 : vector<16x16xf32>
    %cst_24 = arith.constant dense<0xFF800000> : vector<16xf32>
    %44 = vector.multi_reduction <maximumf>, %43, %cst_24 [1] : vector<16x16xf32> to vector<16xf32>
    %45 = vector.shape_cast %44 : vector<16xf32> to vector<16x1xf32>
    %46 = vector.broadcast %45 : vector<16x1xf32> to vector<16x16xf32>
    %47 = arith.subf %43, %46 : vector<16x16xf32>
    %48 = math.exp %47 : vector<16x16xf32>
    %cst_25 = arith.constant dense<0.000000e+00> : vector<16xf32>
    %49 = vector.multi_reduction <add>, %48, %cst_25 [1] : vector<16x16xf32> to vector<16xf32>
    %50 = vector.shape_cast %49 : vector<16xf32> to vector<16x1xf32>
    %51 = tpu.reciprocal %50 {approx = true} : vector<16x1xf32> -> vector<16x1xf32>
    %52 = vector.broadcast %51 : vector<16x1xf32> to vector<16x16xf32>
    %53 = arith.mulf %48, %52 : vector<16x16xf32>
    %cst_26 = arith.constant dense<0.000000e+00> : vector<16x32xf32>
    %54 = tpu.matmul %53, %41, %cst_26 {dimension_numbers = #tpu.dot_dimension_numbers<[1], [0], [0], [1], [0, 0, 1, 1], [], []>} : vector<16x16xf32>, vector<16x32xf32>, vector<16x32xf32> -> vector<16x32xf32>
    %55 = vector.extract_strided_slice %36 {offsets = [0, 32], sizes = [16, 32], strides = [1, 1]} : vector<16x384xf32> to vector<16x32xf32>
    %56 = vector.extract_strided_slice %36 {offsets = [0, 160], sizes = [16, 32], strides = [1, 1]} : vector<16x384xf32> to vector<16x32xf32>
    %57 = vector.extract_strided_slice %36 {offsets = [0, 288], sizes = [16, 32], strides = [1, 1]} : vector<16x384xf32> to vector<16x32xf32>
    %cst_27 = arith.constant dense<0.000000e+00> : vector<16x16xf32>
    %58 = tpu.matmul %55, %56, %cst_27 {dimension_numbers = #tpu.dot_dimension_numbers<[1], [1], [0], [0], [0, 0, 1, 0], [], []>} : vector<16x32xf32>, vector<16x32xf32>, vector<16x16xf32> -> vector<16x16xf32>
    %59 = arith.addf %58, %38 : vector<16x16xf32>
    %cst_28 = arith.constant dense<0xFF800000> : vector<16xf32>
    %60 = vector.multi_reduction <maximumf>, %59, %cst_28 [1] : vector<16x16xf32> to vector<16xf32>
    %61 = vector.shape_cast %60 : vector<16xf32> to vector<16x1xf32>
    %62 = vector.broadcast %61 : vector<16x1xf32> to vector<16x16xf32>
    %63 = arith.subf %59, %62 : vector<16x16xf32>
    %64 = math.exp %63 : vector<16x16xf32>
    %cst_29 = arith.constant dense<0.000000e+00> : vector<16xf32>
    %65 = vector.multi_reduction <add>, %64, %cst_29 [1] : vector<16x16xf32> to vector<16xf32>
    %66 = vector.shape_cast %65 : vector<16xf32> to vector<16x1xf32>
    %67 = tpu.reciprocal %66 {approx = true} : vector<16x1xf32> -> vector<16x1xf32>
    %68 = vector.broadcast %67 : vector<16x1xf32> to vector<16x16xf32>
    %69 = arith.mulf %64, %68 : vector<16x16xf32>
    %cst_30 = arith.constant dense<0.000000e+00> : vector<16x32xf32>
    %70 = tpu.matmul %69, %57, %cst_30 {dimension_numbers = #tpu.dot_dimension_numbers<[1], [0], [0], [1], [0, 0, 1, 1], [], []>} : vector<16x16xf32>, vector<16x32xf32>, vector<16x32xf32> -> vector<16x32xf32>
    %71 = vector.extract_strided_slice %36 {offsets = [0, 64], sizes = [16, 32], strides = [1, 1]} : vector<16x384xf32> to vector<16x32xf32>
    %72 = vector.extract_strided_slice %36 {offsets = [0, 192], sizes = [16, 32], strides = [1, 1]} : vector<16x384xf32> to vector<16x32xf32>
    %73 = vector.extract_strided_slice %36 {offsets = [0, 320], sizes = [16, 32], strides = [1, 1]} : vector<16x384xf32> to vector<16x32xf32>
    %cst_31 = arith.constant dense<0.000000e+00> : vector<16x16xf32>
    %74 = tpu.matmul %71, %72, %cst_31 {dimension_numbers = #tpu.dot_dimension_numbers<[1], [1], [0], [0], [0, 0, 1, 0], [], []>} : vector<16x32xf32>, vector<16x32xf32>, vector<16x16xf32> -> vector<16x16xf32>
    %75 = arith.addf %74, %38 : vector<16x16xf32>
    %cst_32 = arith.constant dense<0xFF800000> : vector<16xf32>
    %76 = vector.multi_reduction <maximumf>, %75, %cst_32 [1] : vector<16x16xf32> to vector<16xf32>
    %77 = vector.shape_cast %76 : vector<16xf32> to vector<16x1xf32>
    %78 = vector.broadcast %77 : vector<16x1xf32> to vector<16x16xf32>
    %79 = arith.subf %75, %78 : vector<16x16xf32>
    %80 = math.exp %79 : vector<16x16xf32>
    %cst_33 = arith.constant dense<0.000000e+00> : vector<16xf32>
    %81 = vector.multi_reduction <add>, %80, %cst_33 [1] : vector<16x16xf32> to vector<16xf32>
    %82 = vector.shape_cast %81 : vector<16xf32> to vector<16x1xf32>
    %83 = tpu.reciprocal %82 {approx = true} : vector<16x1xf32> -> vector<16x1xf32>
    %84 = vector.broadcast %83 : vector<16x1xf32> to vector<16x16xf32>
    %85 = arith.mulf %80, %84 : vector<16x16xf32>
    %cst_34 = arith.constant dense<0.000000e+00> : vector<16x32xf32>
    %86 = tpu.matmul %85, %73, %cst_34 {dimension_numbers = #tpu.dot_dimension_numbers<[1], [0], [0], [1], [0, 0, 1, 1], [], []>} : vector<16x16xf32>, vector<16x32xf32>, vector<16x32xf32> -> vector<16x32xf32>
    %87 = vector.extract_strided_slice %36 {offsets = [0, 96], sizes = [16, 32], strides = [1, 1]} : vector<16x384xf32> to vector<16x32xf32>
    %88 = vector.extract_strided_slice %36 {offsets = [0, 224], sizes = [16, 32], strides = [1, 1]} : vector<16x384xf32> to vector<16x32xf32>
    %89 = vector.extract_strided_slice %36 {offsets = [0, 352], sizes = [16, 32], strides = [1, 1]} : vector<16x384xf32> to vector<16x32xf32>
    %cst_35 = arith.constant dense<0.000000e+00> : vector<16x16xf32>
    %90 = tpu.matmul %87, %88, %cst_35 {dimension_numbers = #tpu.dot_dimension_numbers<[1], [1], [0], [0], [0, 0, 1, 0], [], []>} : vector<16x32xf32>, vector<16x32xf32>, vector<16x16xf32> -> vector<16x16xf32>
    %91 = arith.addf %90, %38 : vector<16x16xf32>
    %cst_36 = arith.constant dense<0xFF800000> : vector<16xf32>
    %92 = vector.multi_reduction <maximumf>, %91, %cst_36 [1] : vector<16x16xf32> to vector<16xf32>
    %93 = vector.shape_cast %92 : vector<16xf32> to vector<16x1xf32>
    %94 = vector.broadcast %93 : vector<16x1xf32> to vector<16x16xf32>
    %95 = arith.subf %91, %94 : vector<16x16xf32>
    %96 = math.exp %95 : vector<16x16xf32>
    %cst_37 = arith.constant dense<0.000000e+00> : vector<16xf32>
    %97 = vector.multi_reduction <add>, %96, %cst_37 [1] : vector<16x16xf32> to vector<16xf32>
    %98 = vector.shape_cast %97 : vector<16xf32> to vector<16x1xf32>
    %99 = tpu.reciprocal %98 {approx = true} : vector<16x1xf32> -> vector<16x1xf32>
    %100 = vector.broadcast %99 : vector<16x1xf32> to vector<16x16xf32>
    %101 = arith.mulf %96, %100 : vector<16x16xf32>
    %cst_38 = arith.constant dense<0.000000e+00> : vector<16x32xf32>
    %102 = tpu.matmul %101, %89, %cst_38 {dimension_numbers = #tpu.dot_dimension_numbers<[1], [0], [0], [1], [0, 0, 1, 1], [], []>} : vector<16x16xf32>, vector<16x32xf32>, vector<16x32xf32> -> vector<16x32xf32>
    %103 = tpu.concatenate %54, %70, %86, %102 in 1 : vector<16x32xf32>, vector<16x32xf32>, vector<16x32xf32>, vector<16x32xf32> -> vector<16x128xf32>
    %104 = arith.truncf %103 : vector<16x128xf32> to vector<16x128xbf16>
    %c0_39 = arith.constant 0 : index
    %c0_40 = arith.constant 0 : index
    %c0_41 = arith.constant 0 : index
    %105 = vector.load %arg10[%c0_39, %c0_40, %c0_41] : memref<1x128x128xbf16, #tpu.memory_space<vmem>>, vector<1x128x128xbf16>
    %106 = vector.shape_cast %105 : vector<1x128x128xbf16> to vector<128x128xbf16>
    %cst_42 = arith.constant dense<0.000000e+00> : vector<16x128xf32>
    %107 = tpu.matmul %104, %106, %cst_42 {dimension_numbers = #tpu.dot_dimension_numbers<[1], [0], [0], [1], [0, 0, 1, 1], [], []>} : vector<16x128xbf16>, vector<128x128xbf16>, vector<16x128xf32> -> vector<16x128xf32>
    %c0_43 = arith.constant 0 : index
    %c0_44 = arith.constant 0 : index
    %c0_45 = arith.constant 0 : index
    %108 = vector.load %arg11[%c0_43, %c0_44, %c0_45] : memref<1x1x128xf32, #tpu.memory_space<vmem>>, vector<1x1x128xf32>
    %109 = vector.shape_cast %108 : vector<1x1x128xf32> to vector<1x128xf32>
    %110 = vector.broadcast %109 : vector<1x128xf32> to vector<16x128xf32>
    %111 = arith.addf %107, %110 : vector<16x128xf32>
    %112 = arith.addf %4, %111 : vector<16x128xf32>
    %c0_46 = arith.constant 0 : index
    %c0_47 = arith.constant 0 : index
    %c0_48 = arith.constant 0 : index
    %113 = vector.load %arg12[%c0_46, %c0_47, %c0_48] : memref<1x1x128xf32, #tpu.memory_space<vmem>>, vector<1x1x128xf32>
    %114 = vector.shape_cast %113 : vector<1x1x128xf32> to vector<1x128xf32>
    %c0_49 = arith.constant 0 : index
    %c0_50 = arith.constant 0 : index
    %c0_51 = arith.constant 0 : index
    %115 = vector.load %arg13[%c0_49, %c0_50, %c0_51] : memref<1x1x128xf32, #tpu.memory_space<vmem>>, vector<1x1x128xf32>
    %116 = vector.shape_cast %115 : vector<1x1x128xf32> to vector<1x128xf32>
    %cst_52 = arith.constant dense<0.000000e+00> : vector<16xf32>
    %117 = vector.multi_reduction <add>, %112, %cst_52 [1] : vector<16x128xf32> to vector<16xf32>
    %118 = vector.shape_cast %117 : vector<16xf32> to vector<16x1xf32>
    %cst_53 = arith.constant 1.280000e+02 : f32
    %119 = vector.broadcast %cst_53 : f32 to vector<16x1xf32>
    %120 = arith.divf %118, %119 : vector<16x1xf32>
    %121 = vector.broadcast %120 : vector<16x1xf32> to vector<16x128xf32>
    %122 = arith.subf %112, %121 : vector<16x128xf32>
    %123 = arith.mulf %122, %122 : vector<16x128xf32>
    %cst_54 = arith.constant dense<0.000000e+00> : vector<16xf32>
    %124 = vector.multi_reduction <add>, %123, %cst_54 [1] : vector<16x128xf32> to vector<16xf32>
    %125 = vector.shape_cast %124 : vector<16xf32> to vector<16x1xf32>
    %cst_55 = arith.constant 1.280000e+02 : f32
    %126 = vector.broadcast %cst_55 : f32 to vector<16x1xf32>
    %127 = arith.divf %125, %126 : vector<16x1xf32>
    %cst_56 = arith.constant 9.99999974E-6 : f32
    %128 = vector.broadcast %cst_56 : f32 to vector<16x1xf32>
    %129 = arith.addf %127, %128 : vector<16x1xf32>
    %130 = math.rsqrt %129 : vector<16x1xf32>
    %131 = vector.broadcast %130 : vector<16x1xf32> to vector<16x128xf32>
    %132 = arith.mulf %122, %131 : vector<16x128xf32>
    %133 = vector.broadcast %114 : vector<1x128xf32> to vector<16x128xf32>
    %134 = arith.mulf %132, %133 : vector<16x128xf32>
    %135 = vector.broadcast %116 : vector<1x128xf32> to vector<16x128xf32>
    %136 = arith.addf %134, %135 : vector<16x128xf32>
    %137 = arith.truncf %136 : vector<16x128xf32> to vector<16x128xbf16>
    %c0_57 = arith.constant 0 : index
    %c0_58 = arith.constant 0 : index
    %c0_59 = arith.constant 0 : index
    %138 = vector.load %arg14[%c0_57, %c0_58, %c0_59] : memref<1x128x512xbf16, #tpu.memory_space<vmem>>, vector<1x128x512xbf16>
    %139 = vector.shape_cast %138 : vector<1x128x512xbf16> to vector<128x512xbf16>
    %cst_60 = arith.constant dense<0.000000e+00> : vector<16x512xf32>
    %140 = tpu.matmul %137, %139, %cst_60 {dimension_numbers = #tpu.dot_dimension_numbers<[1], [0], [0], [1], [0, 0, 1, 1], [], []>} : vector<16x128xbf16>, vector<128x512xbf16>, vector<16x512xf32> -> vector<16x512xf32>
    %c0_61 = arith.constant 0 : index
    %c0_62 = arith.constant 0 : index
    %c0_63 = arith.constant 0 : index
    %141 = vector.load %arg15[%c0_61, %c0_62, %c0_63] : memref<1x1x512xf32, #tpu.memory_space<vmem>>, vector<1x1x512xf32>
    %142 = vector.shape_cast %141 : vector<1x1x512xf32> to vector<1x512xf32>
    %143 = vector.broadcast %142 : vector<1x512xf32> to vector<16x512xf32>
    %144 = arith.addf %140, %143 : vector<16x512xf32>
    %cst_64 = arith.constant 5.000000e-01 : f32
    %145 = vector.broadcast %cst_64 : f32 to vector<16x512xf32>
    %146 = arith.mulf %145, %144 : vector<16x512xf32>
    %cst_65 = arith.constant 4.471500e-02 : f32
    %147 = vector.broadcast %cst_65 : f32 to vector<16x512xf32>
    %148 = arith.mulf %147, %144 : vector<16x512xf32>
    %149 = arith.mulf %148, %144 : vector<16x512xf32>
    %150 = arith.mulf %149, %144 : vector<16x512xf32>
    %151 = arith.addf %144, %150 : vector<16x512xf32>
    %cst_66 = arith.constant 0.797884583 : f32
    %152 = vector.broadcast %cst_66 : f32 to vector<16x512xf32>
    %153 = arith.mulf %152, %151 : vector<16x512xf32>
    %154 = math.tanh %153 : vector<16x512xf32>
    %cst_67 = arith.constant 1.000000e+00 : f32
    %155 = vector.broadcast %cst_67 : f32 to vector<16x512xf32>
    %156 = arith.addf %155, %154 : vector<16x512xf32>
    %157 = arith.mulf %146, %156 : vector<16x512xf32>
    %158 = arith.truncf %157 : vector<16x512xf32> to vector<16x512xbf16>
    %c0_68 = arith.constant 0 : index
    %c0_69 = arith.constant 0 : index
    %c0_70 = arith.constant 0 : index
    %159 = vector.load %arg16[%c0_68, %c0_69, %c0_70] : memref<1x512x128xbf16, #tpu.memory_space<vmem>>, vector<1x512x128xbf16>
    %160 = vector.shape_cast %159 : vector<1x512x128xbf16> to vector<512x128xbf16>
    %cst_71 = arith.constant dense<0.000000e+00> : vector<16x128xf32>
    %161 = tpu.matmul %158, %160, %cst_71 {dimension_numbers = #tpu.dot_dimension_numbers<[1], [0], [0], [1], [0, 0, 1, 1], [], []>} : vector<16x512xbf16>, vector<512x128xbf16>, vector<16x128xf32> -> vector<16x128xf32>
    %c0_72 = arith.constant 0 : index
    %c0_73 = arith.constant 0 : index
    %c0_74 = arith.constant 0 : index
    %162 = vector.load %arg17[%c0_72, %c0_73, %c0_74] : memref<1x1x128xf32, #tpu.memory_space<vmem>>, vector<1x1x128xf32>
    %163 = vector.shape_cast %162 : vector<1x1x128xf32> to vector<1x128xf32>
    %164 = vector.broadcast %163 : vector<1x128xf32> to vector<16x128xf32>
    %165 = arith.addf %161, %164 : vector<16x128xf32>
    %166 = arith.addf %112, %165 : vector<16x128xf32>
    %c0_75 = arith.constant 0 : index
    %c0_76 = arith.constant 0 : index
    %c0_77 = arith.constant 0 : index
    %167 = vector.load %arg20[%c0_75, %c0_76, %c0_77] : memref<1x16x128xf32, #tpu.memory_space<vmem>>, vector<1x16x128xf32>
    %168 = vector.shape_cast %167 : vector<1x16x128xf32> to vector<16x128xf32>
    %169 = vector.shape_cast %166 : vector<16x128xf32> to vector<1x16x128xf32>
    tpu.vector_store %arg20[%c0_75, %c0_76, %c0_77], %169 {strides = array<i32>} : memref<1x16x128xf32, #tpu.memory_space<vmem>>, vector<1x16x128xf32>,
    %c1_i32 = arith.constant 1 : i32
    %170 = arith.cmpi eq, %arg1, %c1_i32 : i32
    %171 = arith.extui %170 : i1 to i32
    %c0_i32_78 = arith.constant 0 : i32
    %172 = arith.cmpi ne, %171, %c0_i32_78 : i32
    scf.if %172 {
      %c0_79 = arith.constant 0 : index
      %c0_80 = arith.constant 0 : index
      %c0_81 = arith.constant 0 : index
      %173 = vector.load %arg20[%c0_79, %c0_80, %c0_81] : memref<1x16x128xf32, #tpu.memory_space<vmem>>, vector<1x16x128xf32>
      %174 = vector.shape_cast %173 : vector<1x16x128xf32> to vector<16x128xf32>
      %c0_82 = arith.constant 0 : index
      %c0_83 = arith.constant 0 : index
      %175 = vector.load %arg18[%c0_82, %c0_83] : memref<1x128xf32, #tpu.memory_space<vmem>>, vector<1x128xf32>
      %c0_84 = arith.constant 0 : index
      %c0_85 = arith.constant 0 : index
      %176 = vector.load %arg19[%c0_84, %c0_85] : memref<1x128xf32, #tpu.memory_space<vmem>>, vector<1x128xf32>
      %cst_86 = arith.constant dense<0.000000e+00> : vector<16xf32>
      %177 = vector.multi_reduction <add>, %174, %cst_86 [1] : vector<16x128xf32> to vector<16xf32>
      %178 = vector.shape_cast %177 : vector<16xf32> to vector<16x1xf32>
      %cst_87 = arith.constant 1.280000e+02 : f32
      %179 = vector.broadcast %cst_87 : f32 to vector<16x1xf32>
      %180 = arith.divf %178, %179 : vector<16x1xf32>
      %181 = vector.broadcast %180 : vector<16x1xf32> to vector<16x128xf32>
      %182 = arith.subf %174, %181 : vector<16x128xf32>
      %183 = arith.mulf %182, %182 : vector<16x128xf32>
      %cst_88 = arith.constant dense<0.000000e+00> : vector<16xf32>
      %184 = vector.multi_reduction <add>, %183, %cst_88 [1] : vector<16x128xf32> to vector<16xf32>
      %185 = vector.shape_cast %184 : vector<16xf32> to vector<16x1xf32>
      %cst_89 = arith.constant 1.280000e+02 : f32
      %186 = vector.broadcast %cst_89 : f32 to vector<16x1xf32>
      %187 = arith.divf %185, %186 : vector<16x1xf32>
      %cst_90 = arith.constant 9.99999974E-6 : f32
      %188 = vector.broadcast %cst_90 : f32 to vector<16x1xf32>
      %189 = arith.addf %187, %188 : vector<16x1xf32>
      %190 = math.rsqrt %189 : vector<16x1xf32>
      %191 = vector.broadcast %190 : vector<16x1xf32> to vector<16x128xf32>
      %192 = arith.mulf %182, %191 : vector<16x128xf32>
      %193 = vector.broadcast %175 : vector<1x128xf32> to vector<16x128xf32>
      %194 = arith.mulf %192, %193 : vector<16x128xf32>
      %195 = vector.broadcast %176 : vector<1x128xf32> to vector<16x128xf32>
      %196 = arith.addf %194, %195 : vector<16x128xf32>
      %c0_91 = arith.constant 0 : index
      %c0_92 = arith.constant 0 : index
      %c0_93 = arith.constant 0 : index
      %197 = vector.load %arg20[%c0_91, %c0_92, %c0_93] : memref<1x16x128xf32, #tpu.memory_space<vmem>>, vector<1x16x128xf32>
      %198 = vector.shape_cast %197 : vector<1x16x128xf32> to vector<16x128xf32>
      %199 = vector.shape_cast %196 : vector<16x128xf32> to vector<1x16x128xf32>
      tpu.vector_store %arg20[%c0_91, %c0_92, %c0_93], %199 {strides = array<i32>} : memref<1x16x128xf32, #tpu.memory_space<vmem>>, vector<1x16x128xf32>,
    } else {
    }
    return
  }
  func.func @transform_0(%arg0: i32, %arg1: i32) -> (i32, i32, i32) {
    %c0_i32 = arith.constant 0 : i32
    %c0_i32_0 = arith.constant 0 : i32
    %c0_i32_1 = arith.constant 0 : i32
    return %arg0, %c0_i32, %c0_i32_0 : i32, i32, i32
  }
  func.func @transform_1(%arg0: i32, %arg1: i32) -> (i32, i32) {
    %c0_i32 = arith.constant 0 : i32
    %c0_i32_0 = arith.constant 0 : i32
    %c0_i32_1 = arith.constant 0 : i32
    return %c0_i32, %c0_i32_0 : i32, i32
  }
  func.func @transform_2(%arg0: i32, %arg1: i32) -> (i32, i32) {
    %c0_i32 = arith.constant 0 : i32
    %c0_i32_0 = arith.constant 0 : i32
    %c0_i32_1 = arith.constant 0 : i32
    return %c0_i32, %c0_i32_0 : i32, i32
  }
  func.func @transform_3(%arg0: i32, %arg1: i32) -> (i32, i32, i32) {
    %c0_i32 = arith.constant 0 : i32
    %c0_i32_0 = arith.constant 0 : i32
    %c0_i32_1 = arith.constant 0 : i32
    return %arg0, %c0_i32, %c0_i32_0 : i32, i32, i32
  }
  func.func @transform_4(%arg0: i32, %arg1: i32) -> (i32, i32, i32) {
    %c0_i32 = arith.constant 0 : i32
    %c0_i32_0 = arith.constant 0 : i32
    %c0_i32_1 = arith.constant 0 : i32
    return %arg1, %c0_i32, %c0_i32_0 : i32, i32, i32
  }
  func.func @transform_5(%arg0: i32, %arg1: i32) -> (i32, i32, i32) {
    %c0_i32 = arith.constant 0 : i32
    %c0_i32_0 = arith.constant 0 : i32
    %c0_i32_1 = arith.constant 0 : i32
    return %arg1, %c0_i32, %c0_i32_0 : i32, i32, i32
  }
  func.func @transform_6(%arg0: i32, %arg1: i32) -> (i32, i32, i32) {
    %c0_i32 = arith.constant 0 : i32
    %c0_i32_0 = arith.constant 0 : i32
    %c0_i32_1 = arith.constant 0 : i32
    return %arg1, %c0_i32, %c0_i32_0 : i32, i32, i32
  }
  func.func @transform_7(%arg0: i32, %arg1: i32) -> (i32, i32, i32) {
    %c0_i32 = arith.constant 0 : i32
    %c0_i32_0 = arith.constant 0 : i32
    %c0_i32_1 = arith.constant 0 : i32
    return %arg1, %c0_i32, %c0_i32_0 : i32, i32, i32
  }
  func.func @transform_8(%arg0: i32, %arg1: i32) -> (i32, i32, i32) {
    %c0_i32 = arith.constant 0 : i32
    %c0_i32_0 = arith.constant 0 : i32
    %c0_i32_1 = arith.constant 0 : i32
    return %arg1, %c0_i32, %c0_i32_0 : i32, i32, i32
  }
  func.func @transform_9(%arg0: i32, %arg1: i32) -> (i32, i32, i32) {
    %c0_i32 = arith.constant 0 : i32
    %c0_i32_0 = arith.constant 0 : i32
    %c0_i32_1 = arith.constant 0 : i32
    return %arg1, %c0_i32, %c0_i32_0 : i32, i32, i32
  }
  func.func @transform_10(%arg0: i32, %arg1: i32) -> (i32, i32, i32) {
    %c0_i32 = arith.constant 0 : i32
    %c0_i32_0 = arith.constant 0 : i32
    %c0_i32_1 = arith.constant 0 : i32
    return %arg1, %c0_i32, %c0_i32_0 : i32, i32, i32
  }
  func.func @transform_11(%arg0: i32, %arg1: i32) -> (i32, i32, i32) {
    %c0_i32 = arith.constant 0 : i32
    %c0_i32_0 = arith.constant 0 : i32
    %c0_i32_1 = arith.constant 0 : i32
    return %arg1, %c0_i32, %c0_i32_0 : i32, i32, i32
  }
  func.func @transform_12(%arg0: i32, %arg1: i32) -> (i32, i32, i32) {
    %c0_i32 = arith.constant 0 : i32
    %c0_i32_0 = arith.constant 0 : i32
    %c0_i32_1 = arith.constant 0 : i32
    return %arg1, %c0_i32, %c0_i32_0 : i32, i32, i32
  }
  func.func @transform_13(%arg0: i32, %arg1: i32) -> (i32, i32, i32) {
    %c0_i32 = arith.constant 0 : i32
    %c0_i32_0 = arith.constant 0 : i32
    %c0_i32_1 = arith.constant 0 : i32
    return %arg1, %c0_i32, %c0_i32_0 : i32, i32, i32
  }
  func.func @transform_14(%arg0: i32, %arg1: i32) -> (i32, i32, i32) {
    %c0_i32 = arith.constant 0 : i32
    %c0_i32_0 = arith.constant 0 : i32
    %c0_i32_1 = arith.constant 0 : i32
    return %arg1, %c0_i32, %c0_i32_0 : i32, i32, i32
  }
  func.func @transform_15(%arg0: i32, %arg1: i32) -> (i32, i32, i32) {
    %c0_i32 = arith.constant 0 : i32
    %c0_i32_0 = arith.constant 0 : i32
    %c0_i32_1 = arith.constant 0 : i32
    return %arg1, %c0_i32, %c0_i32_0 : i32, i32, i32
  }
  func.func @transform_16(%arg0: i32, %arg1: i32) -> (i32, i32) {
    %c0_i32 = arith.constant 0 : i32
    %c0_i32_0 = arith.constant 0 : i32
    %c0_i32_1 = arith.constant 0 : i32
    return %c0_i32, %c0_i32_0 : i32, i32
  }
  func.func @transform_17(%arg0: i32, %arg1: i32) -> (i32, i32) {
    %c0_i32 = arith.constant 0 : i32
    %c0_i32_0 = arith.constant 0 : i32
    %c0_i32_1 = arith.constant 0 : i32
    return %c0_i32, %c0_i32_0 : i32, i32
  }
  func.func @transform_18(%arg0: i32, %arg1: i32) -> (i32, i32, i32) {
    %c0_i32 = arith.constant 0 : i32
    %c0_i32_0 = arith.constant 0 : i32
    %c0_i32_1 = arith.constant 0 : i32
    return %arg0, %c0_i32, %c0_i32_0 : i32, i32, i32
  }
}

</mosaic_0001>

<llo_original>
// kernel: tpu_custom_call.1
$region0: #{tpu_custom_call.1}
  #allocation0 [shape = 'u32[]', space=smem, size = 0x4, offset = 0x4, fixed_abs, tag = 'smem constant byte address 0x4 - core index']
  #allocation1 [shape = 'u32[72,128]{1,0:T(1,128)}', space=vmem, size = 0x9000, scoped, tag = 'internal scratch']
  %s0 = inlined_call_operand.vmem [shape: s32[2,16,1], index: 0, kind: input, shape index: {}]
  %s1 = inlined_call_operand.hbm [shape: f32[16,128], index: 1, kind: input, shape index: {}]
  %s2 = inlined_call_operand.hbm [shape: f32[16,128], index: 2, kind: input, shape index: {}]
  %s3 = inlined_call_operand.vmem [shape: f32[2,16,16], index: 3, kind: input, shape index: {}]
  %s4 = inlined_call_operand.hbm [shape: f32[2,1,128], index: 4, kind: input, shape index: {}]
  %s5 = inlined_call_operand.hbm [shape: f32[2,1,128], index: 5, kind: input, shape index: {}]
  %s6 = inlined_call_operand.hbm [shape: bf16[2,128,384], index: 6, kind: input, shape index: {}]
  %s7 = inlined_call_operand.hbm [shape: f32[2,1,384], index: 7, kind: input, shape index: {}]
  %s8 = inlined_call_operand.hbm [shape: bf16[2,128,128], index: 8, kind: input, shape index: {}]
  %s9 = inlined_call_operand.vmem [shape: f32[2,1,128], index: 9, kind: input, shape index: {}]
  %s10 = inlined_call_operand.hbm [shape: f32[2,1,128], index: 10, kind: input, shape index: {}]
  %s11 = inlined_call_operand.vmem [shape: f32[2,1,128], index: 11, kind: input, shape index: {}]
  %s12 = inlined_call_operand.hbm [shape: bf16[2,128,512], index: 12, kind: input, shape index: {}]
  %s13 = inlined_call_operand.vmem [shape: f32[2,1,512], index: 13, kind: input, shape index: {}]
  %s14 = inlined_call_operand.hbm [shape: bf16[2,512,128], index: 14, kind: input, shape index: {}]
  %s15 = inlined_call_operand.vmem [shape: f32[2,1,128], index: 15, kind: input, shape index: {}]
  %s16 = inlined_call_operand.vmem [shape: f32[1,128], index: 16, kind: input, shape index: {}]
  %s17 = inlined_call_operand.vmem [shape: f32[1,128], index: 17, kind: input, shape index: {}]
  %s18 = inlined_call_operand.hbm [shape: f32[2,16,128], index: 18, kind: output, shape index: {}]
  %s19 = sld [smem:[#allocation0]]
  $region153: #{tpu_custom_call.1} parent=0
    _
  %s21 = ssub.s32 1, %s19
  %s22 = scalar_select 0, %s21, %s19
  $region1: #{tpu_custom_call.1} parent=0
    #allocation2 [shape = 'u8[8192]{0}', space=vmem, size = 0x2000, scoped, tag = 'input window, operand 1, single buffered']
    #allocation3 [shape = 's32[2]{0}', space=sflag, size = 0x8, scoped, tag = 'scoped memory for tpu_custom_call.1']
    #allocation4 [shape = 's32[2]{0}', space=sflag, size = 0x8, scoped, tag = 'scoped memory for tpu_custom_call.1']
    #allocation5 [shape = 'u8[8192]{0}', space=vmem, size = 0x2000, scoped, tag = 'input window, operand 2, single buffered']
    #allocation6 [shape = 's32[1]{0}', space=sflag, size = 0x4, scoped, tag = 'scoped memory for tpu_custom_call.1']
    #allocation7 [shape = 'u8[1024]{0}', space=vmem, size = 0x400, scoped, tag = 'input window, operand 4']
    #allocation8 [shape = 'u8[1024]{0}', space=vmem, size = 0x400, scoped, tag = 'input window, operand 5']
    #allocation9 [shape = 'u8[196608]{0}', space=vmem, size = 0x30000, scoped, tag = 'input window, operand 6']
    #allocation10 [shape = 'u8[3072]{0}', space=vmem, size = 0xc00, scoped, tag = 'input window, operand 7']
    #allocation11 [shape = 'u8[65536]{0}', space=vmem, size = 0x10000, scoped, tag = 'input window, operand 8']
    #allocation12 [shape = 'u8[1024]{0}', space=vmem, size = 0x400, scoped, tag = 'input window, operand 10']
    #allocation13 [shape = 'u8[262144]{0}', space=vmem, size = 0x40000, scoped, tag = 'input window, operand 12']
    #allocation14 [shape = 'u8[262144]{0}', space=vmem, size = 0x40000, scoped, tag = 'input window, operand 14']
    #allocation15 [shape = 'u8[16384]{0}', space=vmem, size = 0x4000, scoped, tag = 'output window, operand 0']
    %23 = vsyncpa [#allocation3], 0
    %24 = vsyncpa [#allocation6], 0
    %25 = vsyncpa [#allocation4], 0
    %s26 = scalar_lea.sflag [#allocation4], 1
    %27 = vsyncpa %s26, 0
    loop: start=0, step=1, limit=6
    $region2: #{tpu_custom_call.1} parent=1 // loop_pre_header
      _
    $region3: #{tpu_custom_call.1} parent=1 // loop_header
      %s29 = sphi 0, %s33
      %p30 = scmp.ge.s32.totalorder %s29, 6
      %s36 = sphi 0, %s48
      %s37 = sphi 0, %s44
      %s38 = sphi 0, %s36
      %s39 = sphi 0, %s37
      %s40 = sphi 0, %s38
      %s41 = sphi 0, %s39
      %s51 = sphi 0, %s53
      %s54 = sphi 0, %s51
      %s55 = sphi 0, %s54
      %s71 = sphi 0, %s55
      %s75 = sphi 0, %s75
      %s77 = sphi 0, %s75
      %s78 = sphi 0, %s77
      %s92 = sphi 0, %s78
      %s96 = sphi 0, %s96
      %s98 = sphi 0, %s96
      %s99 = sphi 0, %s98
      %s113 = sphi 0, %s99
      %s119 = sphi 0, %s121
      %s122 = sphi 0, %s119
      %s123 = sphi 0, %s122
      %s139 = sphi 0, %s123
      %s145 = sphi 0, %s147
      %s148 = sphi 0, %s145
      %s149 = sphi 0, %s148
      %s165 = sphi 0, %s149
      %s171 = sphi 0, %s173
      %s174 = sphi 0, %s171
      %s175 = sphi 0, %s174
      %s191 = sphi 0, %s175
      %s197 = sphi 0, %s199
      %s200 = sphi 0, %s197
      %s201 = sphi 0, %s200
      %s217 = sphi 0, %s201
      %s223 = sphi 0, %s225
      %s226 = sphi 0, %s223
      %s227 = sphi 0, %s226
      %s243 = sphi 0, %s227
      %s249 = sphi 0, %s251
      %s252 = sphi 0, %s249
      %s253 = sphi 0, %s252
      %s269 = sphi 0, %s253
      %s275 = sphi 0, %s277
      %s278 = sphi 0, %s275
      %s279 = sphi 0, %s278
      %s295 = sphi 0, %s279
      %s301 = sphi 0, %s303
      %s304 = sphi 0, %s301
      %s305 = sphi 0, %s304
      %s321 = sphi 0, %s305
      %s327 = sphi 0, %s329
      %s330 = sphi 0, %s327
      %s331 = sphi 0, %s330
      %s347 = sphi 0, %s331
      %s353 = sphi 0, %s355
      %s356 = sphi 0, %s353
      %s357 = sphi 0, %s356
      %s373 = sphi 0, %s357
      %s379 = sphi 0, %s381
      %s382 = sphi 0, %s379
      %s383 = sphi 0, %s382
      %s399 = sphi 0, %s383
      %s405 = sphi 0, %s407
      %s408 = sphi 0, %s405
      %s409 = sphi 0, %s408
      %s425 = sphi 0, %s409
      %s431 = sphi 0, %s433
      %s434 = sphi 0, %s431
      %s435 = sphi 0, %s434
      %s451 = sphi 0, %s435
      %s455 = sphi 0, %s455
      %s457 = sphi 0, %s455
      %s458 = sphi 0, %s457
      %s472 = sphi 0, %s458
      %s476 = sphi 0, %s476
      %s478 = sphi 0, %s476
      %s479 = sphi 0, %s478
      %s493 = sphi 0, %s479
      %s499 = sphi 0, %s501
      %s502 = sphi 0, %s499
      %s503 = sphi 0, %s502
      %s519 = sphi 0, %s503
    $region4: #{tpu_custom_call.1} parent=1 // loop_header_branch
      %32 = sbr.rel (%p30) target = $region8
    $region5: #{tpu_custom_call.1} parent=1 // loop_body
      %s34 = ssub.s32 %s29, 1
      %s35 = ssub.s32 %s29, 2
      %s42 = sadd.s32 1, %s37
      %p43 = scmp.ge.s32.totalorder %s42, 2
      %s44 = scalar_select %p43, 0, %s42
      %s45 = sadd.s32 1, %s36
      %s46 = scalar_select %p43, %s45, %s36
      %p47 = scmp.ge.s32.totalorder %s46, 2
      %s48 = scalar_select %p47, 0, %s46
      %s49 = ssub.s32 %s36, %s48
      %p50 = scmp.eq.s32.totalorder %s49, 0
      %s52 = sadd.s32 %s51, 1
      %s53 = scalar_select %p50, %s51, %s52
      %p56 = pneg %p50
      %p57 = scmp.eq.s32.totalorder %s29, 3
      %p58 = por %p56, %p57
      %p59 = scmp.ne.s32.totalorder %s51, %s54
      %p60 = scmp.eq.s32.totalorder %s29, 0
      %p61 = por %p59, %p60
      %p62 = scmp.ne.s32.totalorder %s51, %s54
      %p63 = scmp.eq.s32.totalorder %s34, 3
      %p64 = por %p62, %p63
      %p65 = scmp.ne.s32.totalorder %s54, %s55
      %p66 = scmp.eq.s32.totalorder %s34, 0
      %p67 = por %p65, %p66
      %p68 = scmp.ne.s32.totalorder %s54, %s55
      %p69 = scmp.eq.s32.totalorder %s35, 3
      %p70 = por %p68, %p69
      %p72 = scmp.ne.s32.totalorder %s55, %s71
      %p73 = scmp.eq.s32.totalorder %s35, 0
      %p74 = por %p72, %p73
      %s76 = sadd.s32 %s75, 1
      %p79 = scmp.eq.s32.totalorder %s29, 3
      %p80 = scmp.ne.s32.totalorder %s75, %s77
      %p81 = scmp.eq.s32.totalorder %s29, 0
      %p82 = por %p80, %p81
      %p83 = scmp.ne.s32.totalorder %s75, %s77
      %p84 = scmp.eq.s32.totalorder %s34, 3
      %p85 = por %p83, %p84
      %p86 = scmp.ne.s32.totalorder %s77, %s78
      %p87 = scmp.eq.s32.totalorder %s34, 0
      %p88 = por %p86, %p87
      %p89 = scmp.ne.s32.totalorder %s77, %s78
      %p90 = scmp.eq.s32.totalorder %s35, 3
      %p91 = por %p89, %p90
      %p93 = scmp.ne.s32.totalorder %s78, %s92
      %p94 = scmp.eq.s32.totalorder %s35, 0
      %p95 = por %p93, %p94
      %s97 = sadd.s32 %s96, 1
      %p100 = scmp.eq.s32.totalorder %s29, 3
      %p101 = scmp.ne.s32.totalorder %s96, %s98
      %p102 = scmp.eq.s32.totalorder %s29, 0
      %p103 = por %p101, %p102
      %p104 = scmp.ne.s32.totalorder %s96, %s98
      %p105 = scmp.eq.s32.totalorder %s34, 3
      %p106 = por %p104, %p105
      %p107 = scmp.ne.s32.totalorder %s98, %s99
      %p108 = scmp.eq.s32.totalorder %s34, 0
      %p109 = por %p107, %p108
      %p110 = scmp.ne.s32.totalorder %s98, %s99
      %p111 = scmp.eq.s32.totalorder %s35, 3
      %p112 = por %p110, %p111
      %p114 = scmp.ne.s32.totalorder %s99, %s113
      %p115 = scmp.eq.s32.totalorder %s35, 0
      %p116 = por %p114, %p115
      %s117 = ssub.s32 %s36, %s48
      %p118 = scmp.eq.s32.totalorder %s117, 0
      %s120 = sadd.s32 %s119, 1
      %s121 = scalar_select %p118, %s119, %s120
      %p124 = pneg %p118
      %p125 = scmp.eq.s32.totalorder %s29, 3
      %p126 = por %p124, %p125
      %p127 = scmp.ne.s32.totalorder %s119, %s122
      %p128 = scmp.eq.s32.totalorder %s29, 0
      %p129 = por %p127, %p128
      %p130 = scmp.ne.s32.totalorder %s119, %s122
      %p131 = scmp.eq.s32.totalorder %s34, 3
      %p132 = por %p130, %p131
      %p133 = scmp.ne.s32.totalorder %s122, %s123
      %p134 = scmp.eq.s32.totalorder %s34, 0
      %p135 = por %p133, %p134
      %p136 = scmp.ne.s32.totalorder %s122, %s123
      %p137 = scmp.eq.s32.totalorder %s35, 3
      %p138 = por %p136, %p137
      %p140 = scmp.ne.s32.totalorder %s123, %s139
      %p141 = scmp.eq.s32.totalorder %s35, 0
      %p142 = por %p140, %p141
      %s143 = ssub.s32 %s37, %s44
      %p144 = scmp.eq.s32.totalorder %s143, 0
      %s146 = sadd.s32 %s145, 1
      %s147 = scalar_select %p144, %s145, %s146
      %p150 = pneg %p144
      %p151 = scmp.eq.s32.totalorder %s29, 3
      %p152 = por %p150, %p151
      %p153 = scmp.ne.s32.totalorder %s145, %s148
      %p154 = scmp.eq.s32.totalorder %s29, 0
      %p155 = por %p153, %p154
      %p156 = scmp.ne.s32.totalorder %s145, %s148
      %p157 = scmp.eq.s32.totalorder %s34, 3
      %p158 = por %p156, %p157
      %p159 = scmp.ne.s32.totalorder %s148, %s149
      %p160 = scmp.eq.s32.totalorder %s34, 0
      %p161 = por %p159, %p160
      %p162 = scmp.ne.s32.totalorder %s148, %s149
      %p163 = scmp.eq.s32.totalorder %s35, 3
      %p164 = por %p162, %p163
      %p166 = scmp.ne.s32.totalorder %s149, %s165
      %p167 = scmp.eq.s32.totalorder %s35, 0
      %p168 = por %p166, %p167
      %s169 = ssub.s32 %s37, %s44
      %p170 = scmp.eq.s32.totalorder %s169, 0
      %s172 = sadd.s32 %s171, 1
      %s173 = scalar_select %p170, %s171, %s172
      %p176 = pneg %p170
      %p177 = scmp.eq.s32.totalorder %s29, 3
      %p178 = por %p176, %p177
      %p179 = scmp.ne.s32.totalorder %s171, %s174
      %p180 = scmp.eq.s32.totalorder %s29, 0
      %p181 = por %p179, %p180
      %p182 = scmp.ne.s32.totalorder %s171, %s174
      %p183 = scmp.eq.s32.totalorder %s34, 3
      %p184 = por %p182, %p183
      %p185 = scmp.ne.s32.totalorder %s174, %s175
      %p186 = scmp.eq.s32.totalorder %s34, 0
      %p187 = por %p185, %p186
      %p188 = scmp.ne.s32.totalorder %s174, %s175
      %p189 = scmp.eq.s32.totalorder %s35, 3
      %p190 = por %p188, %p189
      %p192 = scmp.ne.s32.totalorder %s175, %s191
      %p193 = scmp.eq.s32.totalorder %s35, 0
      %p194 = por %p192, %p193
      %s195 = ssub.s32 %s37, %s44
      %p196 = scmp.eq.s32.totalorder %s195, 0
      %s198 = sadd.s32 %s197, 1
      %s199 = scalar_select %p196, %s197, %s198
      %p202 = pneg %p196
      %p203 = scmp.eq.s32.totalorder %s29, 3
      %p204 = por %p202, %p203
      %p205 = scmp.ne.s32.totalorder %s197, %s200
      %p206 = scmp.eq.s32.totalorder %s29, 0
      %p207 = por %p205, %p206
      %p208 = scmp.ne.s32.totalorder %s197, %s200
      %p209 = scmp.eq.s32.totalorder %s34, 3
      %p210 = por %p208, %p209
      %p211 = scmp.ne.s32.totalorder %s200, %s201
      %p212 = scmp.eq.s32.totalorder %s34, 0
      %p213 = por %p211, %p212
      %p214 = scmp.ne.s32.totalorder %s200, %s201
      %p215 = scmp.eq.s32.totalorder %s35, 3
      %p216 = por %p214, %p215
      %p218 = scmp.ne.s32.totalorder %s201, %s217
      %p219 = scmp.eq.s32.totalorder %s35, 0
      %p220 = por %p218, %p219
      %s221 = ssub.s32 %s37, %s44
      %p222 = scmp.eq.s32.totalorder %s221, 0
      %s224 = sadd.s32 %s223, 1
      %s225 = scalar_select %p222, %s223, %s224
      %p228 = pneg %p222
      %p229 = scmp.eq.s32.totalorder %s29, 3
      %p230 = por %p228, %p229
      %p231 = scmp.ne.s32.totalorder %s223, %s226
      %p232 = scmp.eq.s32.totalorder %s29, 0
      %p233 = por %p231, %p232
      %p234 = scmp.ne.s32.totalorder %s223, %s226
      %p235 = scmp.eq.s32.totalorder %s34, 3
      %p236 = por %p234, %p235
      %p237 = scmp.ne.s32.totalorder %s226, %s227
      %p238 = scmp.eq.s32.totalorder %s34, 0
      %p239 = por %p237, %p238
      %p240 = scmp.ne.s32.totalorder %s226, %s227
      %p241 = scmp.eq.s32.totalorder %s35, 3
      %p242 = por %p240, %p241
      %p244 = scmp.ne.s32.totalorder %s227, %s243
      %p245 = scmp.eq.s32.totalorder %s35, 0
      %p246 = por %p244, %p245
      %s247 = ssub.s32 %s37, %s44
      %p248 = scmp.eq.s32.totalorder %s247, 0
      %s250 = sadd.s32 %s249, 1
      %s251 = scalar_select %p248, %s249, %s250
      %p254 = pneg %p248
      %p255 = scmp.eq.s32.totalorder %s29, 3
      %p256 = por %p254, %p255
      %p257 = scmp.ne.s32.totalorder %s249, %s252
      %p258 = scmp.eq.s32.totalorder %s29, 0
      %p259 = por %p257, %p258
      %p260 = scmp.ne.s32.totalorder %s249, %s252
      %p261 = scmp.eq.s32.totalorder %s34, 3
      %p262 = por %p260, %p261
      %p263 = scmp.ne.s32.totalorder %s252, %s253
      %p264 = scmp.eq.s32.totalorder %s34, 0
      %p265 = por %p263, %p264
      %p266 = scmp.ne.s32.totalorder %s252, %s253
      %p267 = scmp.eq.s32.totalorder %s35, 3
      %p268 = por %p266, %p267
      %p270 = scmp.ne.s32.totalorder %s253, %s269
      %p271 = scmp.eq.s32.totalorder %s35, 0
      %p272 = por %p270, %p271
      %s273 = ssub.s32 %s37, %s44
      %p274 = scmp.eq.s32.totalorder %s273, 0
      %s276 = sadd.s32 %s275, 1
      %s277 = scalar_select %p274, %s275, %s276
      %p280 = pneg %p274
      %p281 = scmp.eq.s32.totalorder %s29, 3
      %p282 = por %p280, %p281
      %p283 = scmp.ne.s32.totalorder %s275, %s278
      %p284 = scmp.eq.s32.totalorder %s29, 0
      %p285 = por %p283, %p284
      %p286 = scmp.ne.s32.totalorder %s275, %s278
      %p287 = scmp.eq.s32.totalorder %s34, 3
      %p288 = por %p286, %p287
      %p289 = scmp.ne.s32.totalorder %s278, %s279
      %p290 = scmp.eq.s32.totalorder %s34, 0
      %p291 = por %p289, %p290
      %p292 = scmp.ne.s32.totalorder %s278, %s279
      %p293 = scmp.eq.s32.totalorder %s35, 3
      %p294 = por %p292, %p293
      %p296 = scmp.ne.s32.totalorder %s279, %s295
      %p297 = scmp.eq.s32.totalorder %s35, 0
      %p298 = por %p296, %p297
      %s299 = ssub.s32 %s37, %s44
      %p300 = scmp.eq.s32.totalorder %s299, 0
      %s302 = sadd.s32 %s301, 1
      %s303 = scalar_select %p300, %s301, %s302
      %p306 = pneg %p300
      %p307 = scmp.eq.s32.totalorder %s29, 3
      %p308 = por %p306, %p307
      %p309 = scmp.ne.s32.totalorder %s301, %s304
      %p310 = scmp.eq.s32.totalorder %s29, 0
      %p311 = por %p309, %p310
      %p312 = scmp.ne.s32.totalorder %s301, %s304
      %p313 = scmp.eq.s32.totalorder %s34, 3
      %p314 = por %p312, %p313
      %p315 = scmp.ne.s32.totalorder %s304, %s305
      %p316 = scmp.eq.s32.totalorder %s34, 0
      %p317 = por %p315, %p316
      %p318 = scmp.ne.s32.totalorder %s304, %s305
      %p319 = scmp.eq.s32.totalorder %s35, 3
      %p320 = por %p318, %p319
      %p322 = scmp.ne.s32.totalorder %s305, %s321
      %p323 = scmp.eq.s32.totalorder %s35, 0
      %p324 = por %p322, %p323
      %s325 = ssub.s32 %s37, %s44
      %p326 = scmp.eq.s32.totalorder %s325, 0
      %s328 = sadd.s32 %s327, 1
      %s329 = scalar_select %p326, %s327, %s328
      %p332 = pneg %p326
      %p333 = scmp.eq.s32.totalorder %s29, 3
      %p334 = por %p332, %p333
      %p335 = scmp.ne.s32.totalorder %s327, %s330
      %p336 = scmp.eq.s32.totalorder %s29, 0
      %p337 = por %p335, %p336
      %p338 = scmp.ne.s32.totalorder %s327, %s330
      %p339 = scmp.eq.s32.totalorder %s34, 3
      %p340 = por %p338, %p339
      %p341 = scmp.ne.s32.totalorder %s330, %s331
      %p342 = scmp.eq.s32.totalorder %s34, 0
      %p343 = por %p341, %p342
      %p344 = scmp.ne.s32.totalorder %s330, %s331
      %p345 = scmp.eq.s32.totalorder %s35, 3
      %p346 = por %p344, %p345
      %p348 = scmp.ne.s32.totalorder %s331, %s347
      %p349 = scmp.eq.s32.totalorder %s35, 0
      %p350 = por %p348, %p349
      %s351 = ssub.s32 %s37, %s44
      %p352 = scmp.eq.s32.totalorder %s351, 0
      %s354 = sadd.s32 %s353, 1
      %s355 = scalar_select %p352, %s353, %s354
      %p358 = pneg %p352
      %p359 = scmp.eq.s32.totalorder %s29, 3
      %p360 = por %p358, %p359
      %p361 = scmp.ne.s32.totalorder %s353, %s356
      %p362 = scmp.eq.s32.totalorder %s29, 0
      %p363 = por %p361, %p362
      %p364 = scmp.ne.s32.totalorder %s353, %s356
      %p365 = scmp.eq.s32.totalorder %s34, 3
      %p366 = por %p364, %p365
      %p367 = scmp.ne.s32.totalorder %s356, %s357
      %p368 = scmp.eq.s32.totalorder %s34, 0
      %p369 = por %p367, %p368
      %p370 = scmp.ne.s32.totalorder %s356, %s357
      %p371 = scmp.eq.s32.totalorder %s35, 3
      %p372 = por %p370, %p371
      %p374 = scmp.ne.s32.totalorder %s357, %s373
      %p375 = scmp.eq.s32.totalorder %s35, 0
      %p376 = por %p374, %p375
      %s377 = ssub.s32 %s37, %s44
      %p378 = scmp.eq.s32.totalorder %s377, 0
      %s380 = sadd.s32 %s379, 1
      %s381 = scalar_select %p378, %s379, %s380
      %p384 = pneg %p378
      %p385 = scmp.eq.s32.totalorder %s29, 3
      %p386 = por %p384, %p385
      %p387 = scmp.ne.s32.totalorder %s379, %s382
      %p388 = scmp.eq.s32.totalorder %s29, 0
      %p389 = por %p387, %p388
      %p390 = scmp.ne.s32.totalorder %s379, %s382
      %p391 = scmp.eq.s32.totalorder %s34, 3
      %p392 = por %p390, %p391
      %p393 = scmp.ne.s32.totalorder %s382, %s383
      %p394 = scmp.eq.s32.totalorder %s34, 0
      %p395 = por %p393, %p394
      %p396 = scmp.ne.s32.totalorder %s382, %s383
      %p397 = scmp.eq.s32.totalorder %s35, 3
      %p398 = por %p396, %p397
      %p400 = scmp.ne.s32.totalorder %s383, %s399
      %p401 = scmp.eq.s32.totalorder %s35, 0
      %p402 = por %p400, %p401
      %s403 = ssub.s32 %s37, %s44
      %p404 = scmp.eq.s32.totalorder %s403, 0
      %s406 = sadd.s32 %s405, 1
      %s407 = scalar_select %p404, %s405, %s406
      %p410 = pneg %p404
      %p411 = scmp.eq.s32.totalorder %s29, 3
      %p412 = por %p410, %p411
      %p413 = scmp.ne.s32.totalorder %s405, %s408
      %p414 = scmp.eq.s32.totalorder %s29, 0
      %p415 = por %p413, %p414
      %p416 = scmp.ne.s32.totalorder %s405, %s408
      %p417 = scmp.eq.s32.totalorder %s34, 3
      %p418 = por %p416, %p417
      %p419 = scmp.ne.s32.totalorder %s408, %s409
      %p420 = scmp.eq.s32.totalorder %s34, 0
      %p421 = por %p419, %p420
      %p422 = scmp.ne.s32.totalorder %s408, %s409
      %p423 = scmp.eq.s32.totalorder %s35, 3
      %p424 = por %p422, %p423
      %p426 = scmp.ne.s32.totalorder %s409, %s425
      %p427 = scmp.eq.s32.totalorder %s35, 0
      %p428 = por %p426, %p427
      %s429 = ssub.s32 %s37, %s44
      %p430 = scmp.eq.s32.totalorder %s429, 0
      %s432 = sadd.s32 %s431, 1
      %s433 = scalar_select %p430, %s431, %s432
      %p436 = pneg %p430
      %p437 = scmp.eq.s32.totalorder %s29, 3
      %p438 = por %p436, %p437
      %p439 = scmp.ne.s32.totalorder %s431, %s434
      %p440 = scmp.eq.s32.totalorder %s29, 0
      %p441 = por %p439, %p440
      %p442 = scmp.ne.s32.totalorder %s431, %s434
      %p443 = scmp.eq.s32.totalorder %s34, 3
      %p444 = por %p442, %p443
      %p445 = scmp.ne.s32.totalorder %s434, %s435
      %p446 = scmp.eq.s32.totalorder %s34, 0
      %p447 = por %p445, %p446
      %p448 = scmp.ne.s32.totalorder %s434, %s435
      %p449 = scmp.eq.s32.totalorder %s35, 3
      %p450 = por %p448, %p449
      %p452 = scmp.ne.s32.totalorder %s435, %s451
      %p453 = scmp.eq.s32.totalorder %s35, 0
      %p454 = por %p452, %p453
      %s456 = sadd.s32 %s455, 1
      %p459 = scmp.eq.s32.totalorder %s29, 3
      %p460 = scmp.ne.s32.totalorder %s455, %s457
      %p461 = scmp.eq.s32.totalorder %s29, 0
      %p462 = por %p460, %p461
      %p463 = scmp.ne.s32.totalorder %s455, %s457
      %p464 = scmp.eq.s32.totalorder %s34, 3
      %p465 = por %p463, %p464
      %p466 = scmp.ne.s32.totalorder %s457, %s458
      %p467 = scmp.eq.s32.totalorder %s34, 0
      %p468 = por %p466, %p467
      %p469 = scmp.ne.s32.totalorder %s457, %s458
      %p470 = scmp.eq.s32.totalorder %s35, 3
      %p471 = por %p469, %p470
      %p473 = scmp.ne.s32.totalorder %s458, %s472
      %p474 = scmp.eq.s32.totalorder %s35, 0
      %p475 = por %p473, %p474
      %s477 = sadd.s32 %s476, 1
      %p480 = scmp.eq.s32.totalorder %s29, 3
      %p481 = scmp.ne.s32.totalorder %s476, %s478
      %p482 = scmp.eq.s32.totalorder %s29, 0
      %p483 = por %p481, %p482
      %p484 = scmp.ne.s32.totalorder %s476, %s478
      %p485 = scmp.eq.s32.totalorder %s34, 3
      %p486 = por %p484, %p485
      %p487 = scmp.ne.s32.totalorder %s478, %s479
      %p488 = scmp.eq.s32.totalorder %s34, 0
      %p489 = por %p487, %p488
      %p490 = scmp.ne.s32.totalorder %s478, %s479
      %p491 = scmp.eq.s32.totalorder %s35, 3
      %p492 = por %p490, %p491
      %p494 = scmp.ne.s32.totalorder %s479, %s493
      %p495 = scmp.eq.s32.totalorder %s35, 0
      %p496 = por %p494, %p495
      %s497 = ssub.s32 %s36, %s48
      %p498 = scmp.eq.s32.totalorder %s497, 0
      %s500 = sadd.s32 %s499, 1
      %s501 = scalar_select %p498, %s499, %s500
      %p504 = pneg %p498
      %p505 = scmp.eq.s32.totalorder %s29, 3
      %p506 = por %p504, %p505
      %p507 = scmp.ne.s32.totalorder %s499, %s502
      %p508 = scmp.eq.s32.totalorder %s29, 0
      %p509 = por %p507, %p508
      %p510 = scmp.ne.s32.totalorder %s499, %s502
      %p511 = scmp.eq.s32.totalorder %s34, 3
      %p512 = por %p510, %p511
      %p513 = scmp.ne.s32.totalorder %s502, %s503
      %p514 = scmp.eq.s32.totalorder %s34, 0
      %p515 = por %p513, %p514
      %p516 = scmp.ne.s32.totalorder %s502, %s503
      %p517 = scmp.eq.s32.totalorder %s35, 3
      %p518 = por %p516, %p517
      %p520 = scmp.ne.s32.totalorder %s503, %s519
      %p521 = scmp.eq.s32.totalorder %s35, 0
      %p522 = por %p520, %p521
      %p523 = scmp.le.s32.totalorder 1, %s29
      %p524 = scmp.lt.s32.totalorder %s29, 5
      %p525 = pnand %p523, %p524
      %p526 = pneg %p525
      // Predicated region
      $region9: #{tpu_custom_call.1} parent=5 // pred_check
        _
      $region10: #{tpu_custom_call.1} parent=5 // pred_check_branch
        %528 = sbr.rel (%p525) target = $region12
      $region11: #{tpu_custom_call.1} parent=5 // pred_region
        %s529 = ssub.s32 %s29, 1
        // Predicated region
        $region13: #{tpu_custom_call.1} parent=11 // pred_check
          %p530 = pneg %p88
        $region14: #{tpu_custom_call.1} parent=11 // pred_check_branch
          %532 = sbr.rel (%p530) target = $region16
        $region15: #{tpu_custom_call.1} parent=11 // pred_region
          %534 = vsyncadd [#allocation3], 0
          %s535 = sshll.u32 %s1, 4
          %s536 = int_to_ptr.hbm [resolvable:$true] %s535
          %s537 = sshll.u32 [#allocation2], 4
          %s538 = int_to_ptr.vmem [resolvable:$true] %s537
          %543 = dma.hbm_to_vmem [thread:$0]  %s536, 256, %s538, [#allocation3], 128, 128, 8
        $region16: #{tpu_custom_call.1} parent=11 // pred_fallthru
          _
        // Predicated region
        $region17: #{tpu_custom_call.1} parent=11 // pred_check
          %p544 = pneg %p109
        $region18: #{tpu_custom_call.1} parent=11 // pred_check_branch
          %546 = sbr.rel (%p544) target = $region20
        $region19: #{tpu_custom_call.1} parent=11 // pred_region
          %548 = vsyncadd [#allocation6], 0
          %s549 = sshll.u32 %s2, 4
          %s550 = int_to_ptr.hbm [resolvable:$true] %s549
          %s551 = sshll.u32 [#allocation5], 4
          %s552 = int_to_ptr.vmem [resolvable:$true] %s551
          %557 = dma.hbm_to_vmem [thread:$0]  %s550, 256, %s552, [#allocation6], 128, 128, 8
        $region20: #{tpu_custom_call.1} parent=11 // pred_fallthru
          _
        // Predicated region
        $region21: #{tpu_custom_call.1} parent=11 // pred_check
          %p558 = pneg %p468
        $region22: #{tpu_custom_call.1} parent=11 // pred_check_branch
          %560 = sbr.rel (%p558) target = $region24
        $region23: #{tpu_custom_call.1} parent=11 // pred_region
          _
        $region24: #{tpu_custom_call.1} parent=11 // pred_fallthru
          _
        // Predicated region
        $region25: #{tpu_custom_call.1} parent=11 // pred_check
          %p561 = pneg %p489
        $region26: #{tpu_custom_call.1} parent=11 // pred_check_branch
          %563 = sbr.rel (%p561) target = $region28
        $region27: #{tpu_custom_call.1} parent=11 // pred_region
          _
        $region28: #{tpu_custom_call.1} parent=11 // pred_fallthru
          _
      $region12: #{tpu_custom_call.1} parent=5 // pred_fallthru
        _
      %p564 = scmp.lt.s32.totalorder %s29, 4
      // Predicated region
      $region29: #{tpu_custom_call.1} parent=5 // pred_check
        %p565 = pneg %p564
      $region30: #{tpu_custom_call.1} parent=5 // pred_check_branch
        %567 = sbr.rel (%p565) target = $region32
      $region31: #{tpu_custom_call.1} parent=5 // pred_region
        // Predicated region
        $region33: #{tpu_custom_call.1} parent=31 // pred_check
          %p568 = pneg %p61
        $region34: #{tpu_custom_call.1} parent=31 // pred_check_branch
          %570 = sbr.rel (%p568) target = $region36
        $region35: #{tpu_custom_call.1} parent=31 // pred_region
          %p571 = scmp.lt.s32.totalorder %s36, 1
          %s572 = scalar_select %p571, %s36, 1
          %s573 = smul.addr %s572, 2
          %s574 = smul.addr %s573, 8
          %s575 = scalar_lea.vmem %s0, %s574
        $region36: #{tpu_custom_call.1} parent=31 // pred_fallthru
          _
        // Predicated region
        $region37: #{tpu_custom_call.1} parent=31 // pred_check
          %p576 = pneg %p129
        $region38: #{tpu_custom_call.1} parent=31 // pred_check_branch
          %578 = sbr.rel (%p576) target = $region40
        $region39: #{tpu_custom_call.1} parent=31 // pred_region
          %p579 = scmp.lt.s32.totalorder %s36, 1
          %s580 = scalar_select %p579, %s36, 1
          %s581 = smul.addr %s580, 2
          %s582 = smul.addr %s581, 8
          %s583 = scalar_lea.vmem %s3, %s582
        $region40: #{tpu_custom_call.1} parent=31 // pred_fallthru
          _
        // Predicated region
        $region41: #{tpu_custom_call.1} parent=31 // pred_check
          %p584 = pneg %p155
        $region42: #{tpu_custom_call.1} parent=31 // pred_check_branch
          %586 = sbr.rel (%p584) target = $region44
        $region43: #{tpu_custom_call.1} parent=31 // pred_region
          %s587 = sand.u32 %s29, 1
          %s588 = scalar_lea.sflag [#allocation3], %s587
          %s589 = sand.u32 %s145, 1
          %s590 = scalar_lea.vmem [#allocation7], %s589
          %592 = vsyncadd %s588, 0
          %s593 = scalar_lea.hbm %s4, %s37
          %s595 = sshll.u32 %s593, 4
          %s596 = int_to_ptr.hbm [resolvable:$true] %s595
          %s597 = sshll.u32 %s590, 4
          %s598 = int_to_ptr.vmem [resolvable:$true] %s597
          %600 = dma.hbm_to_vmem [thread:$0]  %s596, 16, %s598, %s588
        $region44: #{tpu_custom_call.1} parent=31 // pred_fallthru
          _
        // Predicated region
        $region45: #{tpu_custom_call.1} parent=31 // pred_check
          %p601 = pneg %p181
        $region46: #{tpu_custom_call.1} parent=31 // pred_check_branch
          %603 = sbr.rel (%p601) target = $region48
        $region47: #{tpu_custom_call.1} parent=31 // pred_region
          %s604 = sand.u32 %s29, 1
          %s605 = scalar_lea.sflag [#allocation3], %s604
          %s606 = sand.u32 %s171, 1
          %s607 = scalar_lea.vmem [#allocation8], %s606
          %609 = vsyncadd %s605, 0
          %s610 = scalar_lea.hbm %s5, %s37
          %s612 = sshll.u32 %s610, 4
          %s613 = int_to_ptr.hbm [resolvable:$true] %s612
          %s614 = sshll.u32 %s607, 4
          %s615 = int_to_ptr.vmem [resolvable:$true] %s614
          %617 = dma.hbm_to_vmem [thread:$0]  %s613, 16, %s615, %s605
        $region48: #{tpu_custom_call.1} parent=31 // pred_fallthru
          _
        // Predicated region
        $region49: #{tpu_custom_call.1} parent=31 // pred_check
          %p618 = pneg %p207
        $region50: #{tpu_custom_call.1} parent=31 // pred_check_branch
          %620 = sbr.rel (%p618) target = $region52
        $region51: #{tpu_custom_call.1} parent=31 // pred_region
          %s621 = sand.u32 %s29, 1
          %s622 = scalar_lea.sflag [#allocation3], %s621
          %s623 = sand.u32 %s197, 1
          %s624 = smul.addr %s623, 192
          %s625 = scalar_lea.vmem [#allocation9], %s624
          %627 = vsyncadd %s622, 0
          %s628 = smul.addr %s37, 48
          %s629 = smul.addr %s628, 4
          %s630 = scalar_lea.hbm %s6, %s629
          %s631 = sshll.u32 %s630, 4
          %s632 = int_to_ptr.hbm [resolvable:$true] %s631
          %s633 = sshll.u32 %s625, 4
          %s634 = int_to_ptr.vmem [resolvable:$true] %s633
          %639 = dma.hbm_to_vmem [thread:$0]  %s632, 3072, %s634, %s622, 192, 192, 12
        $region52: #{tpu_custom_call.1} parent=31 // pred_fallthru
          _
        // Predicated region
        $region53: #{tpu_custom_call.1} parent=31 // pred_check
          %p640 = pneg %p233
        $region54: #{tpu_custom_call.1} parent=31 // pred_check_branch
          %642 = sbr.rel (%p640) target = $region56
        $region55: #{tpu_custom_call.1} parent=31 // pred_region
          %s643 = sand.u32 %s29, 1
          %s644 = scalar_lea.sflag [#allocation3], %s643
          %s645 = sand.u32 %s223, 1
          %s646 = smul.addr %s645, 3
          %s647 = scalar_lea.vmem [#allocation10], %s646
          %649 = vsyncadd %s644, 0
          %s650 = smul.addr %s37, 3
          %s651 = scalar_lea.hbm %s7, %s650
          %s653 = sshll.u32 %s651, 4
          %s654 = int_to_ptr.hbm [resolvable:$true] %s653
          %s655 = sshll.u32 %s647, 4
          %s656 = int_to_ptr.vmem [resolvable:$true] %s655
          %658 = dma.hbm_to_vmem [thread:$0]  %s654, 48, %s656, %s644
        $region56: #{tpu_custom_call.1} parent=31 // pred_fallthru
          _
        // Predicated region
        $region57: #{tpu_custom_call.1} parent=31 // pred_check
          %p659 = pneg %p259
        $region58: #{tpu_custom_call.1} parent=31 // pred_check_branch
          %661 = sbr.rel (%p659) target = $region60
        $region59: #{tpu_custom_call.1} parent=31 // pred_region
          %s662 = sand.u32 %s29, 1
          %s663 = scalar_lea.sflag [#allocation3], %s662
          %s664 = sand.u32 %s249, 1
          %s665 = smul.addr %s664, 64
          %s666 = scalar_lea.vmem [#allocation11], %s665
          %668 = vsyncadd %s663, 0
          %s669 = smul.addr %s37, 16
          %s670 = smul.addr %s669, 4
          %s671 = scalar_lea.hbm %s8, %s670
          %s672 = sshll.u32 %s671, 4
          %s673 = int_to_ptr.hbm [resolvable:$true] %s672
          %s674 = sshll.u32 %s666, 4
          %s675 = int_to_ptr.vmem [resolvable:$true] %s674
          %680 = dma.hbm_to_vmem [thread:$0]  %s673, 1024, %s675, %s663, 64, 64, 4
        $region60: #{tpu_custom_call.1} parent=31 // pred_fallthru
          _
        // Predicated region
        $region61: #{tpu_custom_call.1} parent=31 // pred_check
          %p681 = pneg %p285
        $region62: #{tpu_custom_call.1} parent=31 // pred_check_branch
          %683 = sbr.rel (%p681) target = $region64
        $region63: #{tpu_custom_call.1} parent=31 // pred_region
          %p684 = scmp.lt.s32.totalorder %s37, 1
          %s685 = scalar_select %p684, %s37, 1
          %s686 = scalar_lea.vmem %s9, %s685
        $region64: #{tpu_custom_call.1} parent=31 // pred_fallthru
          _
        // Predicated region
        $region65: #{tpu_custom_call.1} parent=31 // pred_check
          %p687 = pneg %p311
        $region66: #{tpu_custom_call.1} parent=31 // pred_check_branch
          %689 = sbr.rel (%p687) target = $region68
        $region67: #{tpu_custom_call.1} parent=31 // pred_region
          %s690 = sand.u32 %s29, 1
          %s691 = scalar_lea.sflag [#allocation3], %s690
          %s692 = sand.u32 %s301, 1
          %s693 = scalar_lea.vmem [#allocation12], %s692
          %695 = vsyncadd %s691, 0
          %s696 = scalar_lea.hbm %s10, %s37
          %s698 = sshll.u32 %s696, 4
          %s699 = int_to_ptr.hbm [resolvable:$true] %s698
          %s700 = sshll.u32 %s693, 4
          %s701 = int_to_ptr.vmem [resolvable:$true] %s700
          %703 = dma.hbm_to_vmem [thread:$0]  %s699, 16, %s701, %s691
        $region68: #{tpu_custom_call.1} parent=31 // pred_fallthru
          _
        // Predicated region
        $region69: #{tpu_custom_call.1} parent=31 // pred_check
          %p704 = pneg %p337
        $region70: #{tpu_custom_call.1} parent=31 // pred_check_branch
          %706 = sbr.rel (%p704) target = $region72
        $region71: #{tpu_custom_call.1} parent=31 // pred_region
          %p707 = scmp.lt.s32.totalorder %s37, 1
          %s708 = scalar_select %p707, %s37, 1
          %s709 = scalar_lea.vmem %s11, %s708
        $region72: #{tpu_custom_call.1} parent=31 // pred_fallthru
          _
        // Predicated region
        $region73: #{tpu_custom_call.1} parent=31 // pred_check
          %p710 = pneg %p363
        $region74: #{tpu_custom_call.1} parent=31 // pred_check_branch
          %712 = sbr.rel (%p710) target = $region76
        $region75: #{tpu_custom_call.1} parent=31 // pred_region
          %s713 = sand.u32 %s29, 1
          %s714 = scalar_lea.sflag [#allocation3], %s713
          %s715 = sand.u32 %s353, 1
          %s716 = smul.addr %s715, 256
          %s717 = scalar_lea.vmem [#allocation13], %s716
          %719 = vsyncadd %s714, 0
          %s720 = smul.addr %s37, 64
          %s721 = smul.addr %s720, 4
          %s722 = scalar_lea.hbm %s12, %s721
          %s723 = sshll.u32 %s722, 4
          %s724 = int_to_ptr.hbm [resolvable:$true] %s723
          %s725 = sshll.u32 %s717, 4
          %s726 = int_to_ptr.vmem [resolvable:$true] %s725
          %731 = dma.hbm_to_vmem [thread:$0]  %s724, 4096, %s726, %s714, 256, 256, 16
        $region76: #{tpu_custom_call.1} parent=31 // pred_fallthru
          _
        // Predicated region
        $region77: #{tpu_custom_call.1} parent=31 // pred_check
          %p732 = pneg %p389
        $region78: #{tpu_custom_call.1} parent=31 // pred_check_branch
          %734 = sbr.rel (%p732) target = $region80
        $region79: #{tpu_custom_call.1} parent=31 // pred_region
          %p735 = scmp.lt.s32.totalorder %s37, 1
          %s736 = scalar_select %p735, %s37, 1
          %s737 = smul.addr %s736, 4
          %s738 = scalar_lea.vmem %s13, %s737
        $region80: #{tpu_custom_call.1} parent=31 // pred_fallthru
          _
        // Predicated region
        $region81: #{tpu_custom_call.1} parent=31 // pred_check
          %p739 = pneg %p415
        $region82: #{tpu_custom_call.1} parent=31 // pred_check_branch
          %741 = sbr.rel (%p739) target = $region84
        $region83: #{tpu_custom_call.1} parent=31 // pred_region
          %s742 = sand.u32 %s29, 1
          %s743 = scalar_lea.sflag [#allocation3], %s742
          %s744 = sand.u32 %s405, 1
          %s745 = smul.addr %s744, 256
          %s746 = scalar_lea.vmem [#allocation14], %s745
          %748 = vsyncadd %s743, 0
          %s749 = smul.addr %s37, 64
          %s750 = smul.addr %s749, 4
          %s751 = scalar_lea.hbm %s14, %s750
          %s752 = sshll.u32 %s751, 4
          %s753 = int_to_ptr.hbm [resolvable:$true] %s752
          %s754 = sshll.u32 %s746, 4
          %s755 = int_to_ptr.vmem [resolvable:$true] %s754
          %760 = dma.hbm_to_vmem [thread:$0]  %s753, 4096, %s755, %s743, 64, 64, 4
        $region84: #{tpu_custom_call.1} parent=31 // pred_fallthru
          _
        // Predicated region
        $region85: #{tpu_custom_call.1} parent=31 // pred_check
          %p761 = pneg %p441
        $region86: #{tpu_custom_call.1} parent=31 // pred_check_branch
          %763 = sbr.rel (%p761) target = $region88
        $region87: #{tpu_custom_call.1} parent=31 // pred_region
          %p764 = scmp.lt.s32.totalorder %s37, 1
          %s765 = scalar_select %p764, %s37, 1
          %s766 = scalar_lea.vmem %s15, %s765
        $region88: #{tpu_custom_call.1} parent=31 // pred_fallthru
          _
      $region32: #{tpu_custom_call.1} parent=5 // pred_fallthru
        _
      %p767 = scmp.le.s32.totalorder 1, %s29
      %p768 = scmp.lt.s32.totalorder %s29, 5
      %p769 = pnand %p767, %p768
      %p770 = pneg %p769
      // Predicated region
      $region89: #{tpu_custom_call.1} parent=5 // pred_check
        _
      $region90: #{tpu_custom_call.1} parent=5 // pred_check_branch
        %772 = sbr.rel (%p769) target = $region92
      $region91: #{tpu_custom_call.1} parent=5 // pred_region
        %s773 = ssub.s32 %s29, 1
        // Predicated region
        $region93: #{tpu_custom_call.1} parent=91 // pred_check
          %p774 = pneg %p88
        $region94: #{tpu_custom_call.1} parent=91 // pred_check_branch
          %776 = sbr.rel (%p774) target = $region96
        $region95: #{tpu_custom_call.1} parent=91 // pred_region
          %778 = dma.done [#allocation3], 256
        $region96: #{tpu_custom_call.1} parent=91 // pred_fallthru
          _
        // Predicated region
        $region97: #{tpu_custom_call.1} parent=91 // pred_check
          %p779 = pneg %p109
        $region98: #{tpu_custom_call.1} parent=91 // pred_check_branch
          %781 = sbr.rel (%p779) target = $region100
        $region99: #{tpu_custom_call.1} parent=91 // pred_region
          %783 = dma.done [#allocation6], 256
        $region100: #{tpu_custom_call.1} parent=91 // pred_fallthru
          _
        %s784 = sand.u32 %s34, 1
        %s785 = scalar_lea.sflag [#allocation3], %s784
        %s786 = sand.u32 %s148, 1
        %s787 = scalar_lea.vmem [#allocation7], %s786
        // Predicated region
        $region101: #{tpu_custom_call.1} parent=91 // pred_check
          %p788 = pneg %p161
        $region102: #{tpu_custom_call.1} parent=91 // pred_check_branch
          %790 = sbr.rel (%p788) target = $region104
        $region103: #{tpu_custom_call.1} parent=91 // pred_region
          %792 = dma.done %s785, 16
        $region104: #{tpu_custom_call.1} parent=91 // pred_fallthru
          _
        %s793 = sand.u32 %s34, 1
        %s794 = scalar_lea.sflag [#allocation3], %s793
        %s795 = sand.u32 %s174, 1
        %s796 = scalar_lea.vmem [#allocation8], %s795
        // Predicated region
        $region105: #{tpu_custom_call.1} parent=91 // pred_check
          %p797 = pneg %p187
        $region106: #{tpu_custom_call.1} parent=91 // pred_check_branch
          %799 = sbr.rel (%p797) target = $region108
        $region107: #{tpu_custom_call.1} parent=91 // pred_region
          %801 = dma.done %s794, 16
        $region108: #{tpu_custom_call.1} parent=91 // pred_fallthru
          _
        %s802 = sand.u32 %s34, 1
        %s803 = scalar_lea.sflag [#allocation3], %s802
        %s804 = sand.u32 %s200, 1
        %s805 = smul.addr %s804, 192
        %s806 = scalar_lea.vmem [#allocation9], %s805
        // Predicated region
        $region109: #{tpu_custom_call.1} parent=91 // pred_check
          %p807 = pneg %p213
        $region110: #{tpu_custom_call.1} parent=91 // pred_check_branch
          %809 = sbr.rel (%p807) target = $region112
        $region111: #{tpu_custom_call.1} parent=91 // pred_region
          %811 = dma.done %s803, 3072
        $region112: #{tpu_custom_call.1} parent=91 // pred_fallthru
          _
        %s812 = sand.u32 %s34, 1
        %s813 = scalar_lea.sflag [#allocation3], %s812
        %s814 = sand.u32 %s226, 1
        %s815 = smul.addr %s814, 3
        %s816 = scalar_lea.vmem [#allocation10], %s815
        // Predicated region
        $region113: #{tpu_custom_call.1} parent=91 // pred_check
          %p817 = pneg %p239
        $region114: #{tpu_custom_call.1} parent=91 // pred_check_branch
          %819 = sbr.rel (%p817) target = $region116
        $region115: #{tpu_custom_call.1} parent=91 // pred_region
          %821 = dma.done %s813, 48
        $region116: #{tpu_custom_call.1} parent=91 // pred_fallthru
          _
        %s822 = sand.u32 %s34, 1
        %s823 = scalar_lea.sflag [#allocation3], %s822
        %s824 = sand.u32 %s252, 1
        %s825 = smul.addr %s824, 64
        %s826 = scalar_lea.vmem [#allocation11], %s825
        // Predicated region
        $region117: #{tpu_custom_call.1} parent=91 // pred_check
          %p827 = pneg %p265
        $region118: #{tpu_custom_call.1} parent=91 // pred_check_branch
          %829 = sbr.rel (%p827) target = $region120
        $region119: #{tpu_custom_call.1} parent=91 // pred_region
          %831 = dma.done %s823, 1024
        $region120: #{tpu_custom_call.1} parent=91 // pred_fallthru
          _
        %s832 = sand.u32 %s34, 1
        %s833 = scalar_lea.sflag [#allocation3], %s832
        %s834 = sand.u32 %s304, 1
        %s835 = scalar_lea.vmem [#allocation12], %s834
        // Predicated region
        $region121: #{tpu_custom_call.1} parent=91 // pred_check
          %p836 = pneg %p317
        $region122: #{tpu_custom_call.1} parent=91 // pred_check_branch
          %838 = sbr.rel (%p836) target = $region124
        $region123: #{tpu_custom_call.1} parent=91 // pred_region
          %840 = dma.done %s833, 16
        $region124: #{tpu_custom_call.1} parent=91 // pred_fallthru
          _
        %s841 = sand.u32 %s34, 1
        %s842 = scalar_lea.sflag [#allocation3], %s841
        %s843 = sand.u32 %s356, 1
        %s844 = smul.addr %s843, 256
        %s845 = scalar_lea.vmem [#allocation13], %s844
        // Predicated region
        $region125: #{tpu_custom_call.1} parent=91 // pred_check
          %p846 = pneg %p369
        $region126: #{tpu_custom_call.1} parent=91 // pred_check_branch
          %848 = sbr.rel (%p846) target = $region128
        $region127: #{tpu_custom_call.1} parent=91 // pred_region
          %850 = dma.done %s842, 4096
        $region128: #{tpu_custom_call.1} parent=91 // pred_fallthru
          _
        %s851 = sand.u32 %s34, 1
        %s852 = scalar_lea.sflag [#allocation3], %s851
        %s853 = sand.u32 %s408, 1
        %s854 = smul.addr %s853, 256
        %s855 = scalar_lea.vmem [#allocation14], %s854
        // Predicated region
        $region129: #{tpu_custom_call.1} parent=91 // pred_check
          %p856 = pneg %p421
        $region130: #{tpu_custom_call.1} parent=91 // pred_check_branch
          %858 = sbr.rel (%p856) target = $region132
        $region131: #{tpu_custom_call.1} parent=91 // pred_region
          %860 = dma.done %s852, 4096
        $region132: #{tpu_custom_call.1} parent=91 // pred_fallthru
          _
        %p861 = scmp.lt.s32.totalorder %s38, 1
        %s862 = scalar_select %p861, %s38, 1
        %s863 = smul.addr %s862, 2
        %s864 = smul.addr %s863, 8
        %s865 = scalar_lea.vmem %s0, %s864
        %p866 = pneg %p67
        %p867 = pneg %p64
        %p868 = pneg %p88
        %p869 = pneg %p85
        %p870 = pneg %p109
        %p871 = pneg %p106
        %p872 = scmp.lt.s32.totalorder %s38, 1
        %s873 = scalar_select %p872, %s38, 1
        %s874 = smul.addr %s873, 2
        %s875 = smul.addr %s874, 8
        %s876 = scalar_lea.vmem %s3, %s875
        %p877 = pneg %p135
        %p878 = pneg %p132
        %s879 = sand.u32 %s34, 1
        %s880 = scalar_lea.sflag [#allocation3], %s879
        %s881 = sand.u32 %s148, 1
        %s882 = scalar_lea.vmem [#allocation7], %s881
        %p883 = pneg %p161
        %p884 = pneg %p158
        %s885 = sand.u32 %s34, 1
        %s886 = scalar_lea.sflag [#allocation3], %s885
        %s887 = sand.u32 %s174, 1
        %s888 = scalar_lea.vmem [#allocation8], %s887
        %p889 = pneg %p187
        %p890 = pneg %p184
        %s891 = sand.u32 %s34, 1
        %s892 = scalar_lea.sflag [#allocation3], %s891
        %s893 = sand.u32 %s200, 1
        %s894 = smul.addr %s893, 192
        %s895 = scalar_lea.vmem [#allocation9], %s894
        %p896 = pneg %p213
        %p897 = pneg %p210
        %s898 = sand.u32 %s34, 1
        %s899 = scalar_lea.sflag [#allocation3], %s898
        %s900 = sand.u32 %s226, 1
        %s901 = smul.addr %s900, 3
        %s902 = scalar_lea.vmem [#allocation10], %s901
        %p903 = pneg %p239
        %p904 = pneg %p236
        %s905 = sand.u32 %s34, 1
        %s906 = scalar_lea.sflag [#allocation3], %s905
        %s907 = sand.u32 %s252, 1
        %s908 = smul.addr %s907, 64
        %s909 = scalar_lea.vmem [#allocation11], %s908
        %p910 = pneg %p265
        %p911 = pneg %p262
        %p912 = scmp.lt.s32.totalorder %s39, 1
        %s913 = scalar_select %p912, %s39, 1
        %s914 = scalar_lea.vmem %s9, %s913
        %p915 = pneg %p291
        %p916 = pneg %p288
        %s917 = sand.u32 %s34, 1
        %s918 = scalar_lea.sflag [#allocation3], %s917
        %s919 = sand.u32 %s304, 1
        %s920 = scalar_lea.vmem [#allocation12], %s919
        %p921 = pneg %p317
        %p922 = pneg %p314
        %p923 = scmp.lt.s32.totalorder %s39, 1
        %s924 = scalar_select %p923, %s39, 1
        %s925 = scalar_lea.vmem %s11, %s924
        %p926 = pneg %p343
        %p927 = pneg %p340
        %s928 = sand.u32 %s34, 1
        %s929 = scalar_lea.sflag [#allocation3], %s928
        %s930 = sand.u32 %s356, 1
        %s931 = smul.addr %s930, 256
        %s932 = scalar_lea.vmem [#allocation13], %s931
        %p933 = pneg %p369
        %p934 = pneg %p366
        %p935 = scmp.lt.s32.totalorder %s39, 1
        %s936 = scalar_select %p935, %s39, 1
        %s937 = smul.addr %s936, 4
        %s938 = scalar_lea.vmem %s13, %s937
        %p939 = pneg %p395
        %p940 = pneg %p392
        %s941 = sand.u32 %s34, 1
        %s942 = scalar_lea.sflag [#allocation3], %s941
        %s943 = sand.u32 %s408, 1
        %s944 = smul.addr %s943, 256
        %s945 = scalar_lea.vmem [#allocation14], %s944
        %p946 = pneg %p421
        %p947 = pneg %p418
        %p948 = scmp.lt.s32.totalorder %s39, 1
        %s949 = scalar_select %p948, %s39, 1
        %s950 = scalar_lea.vmem %s15, %s949
        %p951 = pneg %p447
        %p952 = pneg %p444
        %p953 = pneg %p468
        %p954 = pneg %p465
        %p955 = pneg %p489
        %p956 = pneg %p486
        %p957 = pneg %p515
        %p958 = pneg %p512
        %s959 = sand.u32 %s502, 1
        %s960 = scalar_lea.sflag [#allocation4], %s959
        %s961 = sand.u32 %s502, 1
        %s962 = smul.addr %s961, 16
        %s963 = scalar_lea.vmem [#allocation15], %s962
        %p964 = scmp.lt.s32.totalorder %s38, 1
        %s965 = scalar_select %p964, %s38, 1
        %s966 = smul.addr %s965, 2
        %s967 = smul.addr %s966, 8
        %s968 = scalar_lea.vmem %s0, %s967
        %p969 = scmp.lt.s32.totalorder %s38, 1
        %s970 = scalar_select %p969, %s38, 1
        %s971 = smul.addr %s970, 2
        %s972 = smul.addr %s971, 8
        %s973 = scalar_lea.vmem %s3, %s972
        %p974 = scmp.lt.s32.totalorder %s39, 1
        %s975 = scalar_select %p974, %s39, 1
        %s976 = scalar_lea.vmem %s9, %s975
        %p977 = scmp.lt.s32.totalorder %s39, 1
        %s978 = scalar_select %p977, %s39, 1
        %s979 = scalar_lea.vmem %s11, %s978
        %p980 = scmp.lt.s32.totalorder %s39, 1
        %s981 = scalar_select %p980, %s39, 1
        %s982 = smul.addr %s981, 4
        %s983 = scalar_lea.vmem %s13, %s982
        %p984 = scmp.lt.s32.totalorder %s39, 1
        %s985 = scalar_select %p984, %s39, 1
        %s986 = scalar_lea.vmem %s15, %s985
        %p987 = scmp.eq.s32.totalorder %s39, 0
        // Predicated region
        $region133: #{tpu_custom_call.1} parent=91 // pred_check
          %p988 = pneg %p987
        $region134: #{tpu_custom_call.1} parent=91 // pred_check_branch
          %990 = sbr.rel (%p988) target = $region136
        $region135: #{tpu_custom_call.1} parent=91 // pred_region
          %v991 = vld [vmem:[%s968] sm:$0xff]
          %v992 = vld [vmem:[%s968 + $0x8] sm:$0xff]
          %v993 = vlaneseq
          %v994 = vand.u32 %v993, 127
          %995 = vset.pattern.permute.xlu0 0
          %996 = vperm.xlu0 %995, %v991
          %v997 = vpop.permute.xlu0 %996
          %998 = vset.pattern.permute.xlu0 0
          %999 = vperm.xlu0 %998, %v992
          %v1000 = vpop.permute.xlu0 %999
          %vm1001 = vcmp.eq.s32.totalorder %v994, %v997
          %vm1002 = vcmp.eq.s32.totalorder %v994, %v1000
          %v1003 = vsel %vm1001, 1.0, 0.0
          %v1004 = vsel %vm1002, 1.0, 0.0
          %v1005 = vld [vmem:[#allocation2] sm:$0xff]
          %v1006 = vld [vmem:[#allocation2 + $0x8] sm:$0xff]
          %v1007 = vld [vmem:[#allocation5] sm:$0xff]
          %v1008 = vld [vmem:[#allocation5 + $0x8] sm:$0xff]
          %vm1009 = vcmask 130048
          %v1011 = vsel %vm1009, %v1003, 0
          %v1014 = vsel %vm1009, %v1004, 0
          %1016 = vmatpush.msra.mxu0 0.0
          %1017 = vmatpush.msra.mxu0 0.0
          %1018 = vmatpush.msra.mxu0 0.0
          %1019 = vmatpush.msra.mxu0 0.0
          %1020 = vmatpush.msra.mxu0 0.0
          %1021 = vmatpush.msra.mxu0 0.0
          %1022 = vmatpush.msra.mxu0 0.0
          %1023 = vmatpush.msra.mxu0 0.0
          %1024 = vmatpush.msra.mxu0 0.0
          %1025 = vmatpush.msra.mxu0 0.0
          %1026 = vmatpush.msra.mxu0 0.0
          %1027 = vmatpush.msra.mxu0 0.0
          %1028 = vmatpush.msra.mxu0 0.0
          %1029 = vmatpush.msra.mxu0 0.0
          %1030 = vmatpush.msra.mxu0 %v1006
          %1031 = vmatpush.msra.mxu0 %v1005
          %1032 = vmatmul.f32.gmra.mxu0 %v1011
          %v1033 = vpop.f32.mrf.mxu0
          %v1034 = vadd.f32 %v1007, %v1033
          %1035 = vmatmul.f32.gmra.mxu0 %v1014
          %v1036 = vpop.f32.mrf.mxu0
          %v1037 = vadd.f32 %v1008, %v1036
          %1038 = vdwg.mxu0
          %1039 = vst [vmem:[%s963] sm:$0xff] %v1034
          %1040 = vst [vmem:[%s963 + $0x8] sm:$0xff] %v1037
        $region136: #{tpu_custom_call.1} parent=91 // pred_fallthru
          _
        %v1041 = vld [vmem:[%s963] sm:$0xff]
        %v1042 = vld [vmem:[%s963 + $0x8] sm:$0xff]
        %v1043 = vld [vmem:[%s787] sm:$0x1]
        %v1044 = vld [vmem:[%s796] sm:$0x1]
        %1045 = vadd.xlane.f32.xlu0 %v1041
        %v1046 = vpop.xlane.xlu0 %1045
        %1047 = vadd.xlane.f32.xlu0 %v1042
        %v1048 = vpop.xlane.xlu0 %1047
        %v1049 = vrcp.pop 128.0
        %v1050 = vmul.f32 128.0, %v1049
        %v1051 = vsub.f32 1.0, %v1050
        %v1052 = vmul.f32 %v1049, %v1051
        %v1053 = vadd.f32 %v1049, %v1052
        %vm1054 = vweird.f32 %v1049
        %v1055 = vsel %vm1054, %v1049, %v1053
        %v1056 = vmul.f32 %v1046, %v1055
        %v1057 = vmul.f32 %v1048, %v1055
        %v1058 = vsub.f32 %v1041, %v1056
        %v1059 = vsub.f32 %v1042, %v1057
        %v1060 = vmul.f32 %v1058, %v1058
        %v1061 = vmul.f32 %v1059, %v1059
        %1062 = vadd.xlane.f32.xlu0 %v1060
        %v1063 = vpop.xlane.xlu0 %1062
        %1064 = vadd.xlane.f32.xlu0 %v1061
        %v1065 = vpop.xlane.xlu0 %1064
        %v1066 = vmul.f32 %v1063, %v1055
        %v1067 = vmul.f32 %v1065, %v1055
        %v1068 = vadd.f32 %v1066, 1e-05
        %v1069 = vadd.f32 %v1067, 1e-05
        %v1070 = vrsqrt.pop %v1068
        %v1071 = vmul.f32 %v1070, %v1068
        %v1072 = vmul.f32 %v1071, %v1070
        %v1073 = vmul.f32 0.5, %v1072
        %v1074 = vsub.f32 1.5, %v1073
        %v1075 = vmul.f32 %v1070, %v1074
        %vm1076 = vweird.f32 %v1068
        %vm1077 = vweird.f32 %v1070
        %vm1078 = vmor %vm1076, %vm1077
        %v1079 = vsel %vm1078, %v1070, %v1075
        %v1080 = vrsqrt.pop %v1069
        %v1081 = vmul.f32 %v1080, %v1069
        %v1082 = vmul.f32 %v1081, %v1080
        %v1083 = vmul.f32 0.5, %v1082
        %v1084 = vsub.f32 1.5, %v1083
        %v1085 = vmul.f32 %v1080, %v1084
        %vm1086 = vweird.f32 %v1069
        %vm1087 = vweird.f32 %v1080
        %vm1088 = vmor %vm1086, %vm1087
        %v1089 = vsel %vm1088, %v1080, %v1085
        %v1090 = vmul.f32 %v1058, %v1079
        %v1091 = vmul.f32 %v1059, %v1089
        %v1093 = vperm.slane %v1043, 0
        %v1095 = vmul.f32 %v1090, %v1093
        %v1096 = vmul.f32 %v1091, %v1093
        %v1098 = vperm.slane %v1044, 0
        %v1100 = vadd.f32 %v1095, %v1098
        %v1101 = vadd.f32 %v1096, %v1098
        %v1102 = vpack.c.bf16 %v1101, %v1100
        %v1103 = vld [vmem:[%s806] sm:$0xff]
        %v1104 = vld [vmem:[%s806 + $0x8] sm:$0xf]
        %v1105 = vld [vmem:[%s806 + $0xc] sm:$0xff]
        %v1106 = vld [vmem:[%s806 + $0x14] sm:$0xf]
        %v1107 = vld [vmem:[%s806 + $0x18] sm:$0xff]
        %v1108 = vld [vmem:[%s806 + $0x20] sm:$0xf]
        %v1109 = vld [vmem:[%s806 + $0x24] sm:$0xff]
        %v1110 = vld [vmem:[%s806 + $0x2c] sm:$0xf]
        %v1111 = vld [vmem:[%s806 + $0x30] sm:$0xff]
        %v1112 = vld [vmem:[%s806 + $0x38] sm:$0xf]
        %v1113 = vld [vmem:[%s806 + $0x3c] sm:$0xff]
        %v1114 = vld [vmem:[%s806 + $0x44] sm:$0xf]
        %v1115 = vld [vmem:[%s806 + $0x48] sm:$0xff]
        %v1116 = vld [vmem:[%s806 + $0x50] sm:$0xf]
        %v1117 = vld [vmem:[%s806 + $0x54] sm:$0xff]
        %v1118 = vld [vmem:[%s806 + $0x5c] sm:$0xf]
        %v1119 = vld [vmem:[%s806 + $0x60] sm:$0xff]
        %v1120 = vld [vmem:[%s806 + $0x68] sm:$0xf]
        %v1121 = vld [vmem:[%s806 + $0x6c] sm:$0xff]
        %v1122 = vld [vmem:[%s806 + $0x74] sm:$0xf]
        %v1123 = vld [vmem:[%s806 + $0x78] sm:$0xff]
        %v1124 = vld [vmem:[%s806 + $0x80] sm:$0xf]
        %v1125 = vld [vmem:[%s806 + $0x84] sm:$0xff]
        %v1126 = vld [vmem:[%s806 + $0x8c] sm:$0xf]
        %v1127 = vld [vmem:[%s806 + $0x90] sm:$0xff]
        %v1128 = vld [vmem:[%s806 + $0x98] sm:$0xf]
        %v1129 = vld [vmem:[%s806 + $0x9c] sm:$0xff]
        %v1130 = vld [vmem:[%s806 + $0xa4] sm:$0xf]
        %v1131 = vld [vmem:[%s806 + $0xa8] sm:$0xff]
        %v1132 = vld [vmem:[%s806 + $0xb0] sm:$0xf]
        %v1133 = vld [vmem:[%s806 + $0xb4] sm:$0xff]
        %v1134 = vld [vmem:[%s806 + $0xbc] sm:$0xf]
        %v1135 = vld [vmem:[%s816] sm:$0x7]
        %v1137 = vperm.slane %v1135, 0
        %v1138 = vperm.slane %v1135, 1
        %v1139 = vperm.slane %v1135, 2
        %v1175 = vunpack.c.l.b16 %v1103
        %v1176 = vunpack.c.h.b16 %v1103
        %v1177 = vunpack.c.l.b16 %v1104
        %v1178 = vunpack.c.l.b16 %v1105
        %v1179 = vunpack.c.h.b16 %v1105
        %v1180 = vunpack.c.l.b16 %v1106
        %v1181 = vunpack.c.l.b16 %v1107
        %v1182 = vunpack.c.h.b16 %v1107
        %v1183 = vunpack.c.l.b16 %v1108
        %v1184 = vunpack.c.l.b16 %v1109
        %v1185 = vunpack.c.h.b16 %v1109
        %v1186 = vunpack.c.l.b16 %v1110
        %v1187 = vunpack.c.l.b16 %v1111
        %v1188 = vunpack.c.h.b16 %v1111
        %v1189 = vunpack.c.l.b16 %v1112
        %v1190 = vunpack.c.l.b16 %v1113
        %v1191 = vunpack.c.h.b16 %v1113
        %v1192 = vunpack.c.l.b16 %v1114
        %v1193 = vunpack.c.l.b16 %v1115
        %v1194 = vunpack.c.h.b16 %v1115
        %v1195 = vunpack.c.l.b16 %v1116
        %v1196 = vunpack.c.l.b16 %v1117
        %v1197 = vunpack.c.h.b16 %v1117
        %v1198 = vunpack.c.l.b16 %v1118
        %v1199 = vunpack.c.l.b16 %v1119
        %v1200 = vunpack.c.h.b16 %v1119
        %v1201 = vunpack.c.l.b16 %v1120
        %v1202 = vunpack.c.l.b16 %v1121
        %v1203 = vunpack.c.h.b16 %v1121
        %v1204 = vunpack.c.l.b16 %v1122
        %v1205 = vunpack.c.l.b16 %v1123
        %v1206 = vunpack.c.h.b16 %v1123
        %v1207 = vunpack.c.l.b16 %v1124
        %v1208 = vunpack.c.l.b16 %v1125
        %v1209 = vunpack.c.h.b16 %v1125
        %v1210 = vunpack.c.l.b16 %v1126
        %v1211 = vunpack.c.l.b16 %v1127
        %v1212 = vunpack.c.h.b16 %v1127
        %v1213 = vunpack.c.l.b16 %v1128
        %v1214 = vunpack.c.l.b16 %v1129
        %v1215 = vunpack.c.h.b16 %v1129
        %v1216 = vunpack.c.l.b16 %v1130
        %v1217 = vunpack.c.l.b16 %v1131
        %v1218 = vunpack.c.h.b16 %v1131
        %v1219 = vunpack.c.l.b16 %v1132
        %v1220 = vunpack.c.l.b16 %v1133
        %v1221 = vunpack.c.h.b16 %v1133
        %v1222 = vunpack.c.l.b16 %v1134
        %v1223 = vpack.c.b16 %v1178, %v1175
        %v1224 = vpack.c.b16 %v1179, %v1176
        %v1225 = vpack.c.b16 %v1180, %v1177
        %v1226 = vpack.c.b16 %v1184, %v1181
        %v1227 = vpack.c.b16 %v1185, %v1182
        %v1228 = vpack.c.b16 %v1186, %v1183
        %v1229 = vpack.c.b16 %v1190, %v1187
        %v1230 = vpack.c.b16 %v1191, %v1188
        %v1231 = vpack.c.b16 %v1192, %v1189
        %v1232 = vpack.c.b16 %v1196, %v1193
        %v1233 = vpack.c.b16 %v1197, %v1194
        %v1234 = vpack.c.b16 %v1198, %v1195
        %v1235 = vpack.c.b16 %v1202, %v1199
        %v1236 = vpack.c.b16 %v1203, %v1200
        %v1237 = vpack.c.b16 %v1204, %v1201
        %v1238 = vpack.c.b16 %v1208, %v1205
        %v1239 = vpack.c.b16 %v1209, %v1206
        %v1240 = vpack.c.b16 %v1210, %v1207
        %v1241 = vpack.c.b16 %v1214, %v1211
        %v1242 = vpack.c.b16 %v1215, %v1212
        %v1243 = vpack.c.b16 %v1216, %v1213
        %v1244 = vpack.c.b16 %v1220, %v1217
        %v1245 = vpack.c.b16 %v1221, %v1218
        %v1246 = vpack.c.b16 %v1222, %v1219
        %1271 = vmatpush.bf16.msra.mxu0 %v1244
        %1272 = vmatpush.bf16.msra.mxu0 %v1241
        %1273 = vmatpush.bf16.msra.mxu0 %v1238
        %1274 = vmatpush.bf16.msra.mxu0 %v1235
        %1275 = vmatpush.bf16.msra.mxu0 %v1232
        %1276 = vmatpush.bf16.msra.mxu0 %v1229
        %1277 = vmatpush.bf16.msra.mxu0 %v1226
        %1278 = vmatpush.bf16.msra.mxu0 %v1223
        %1279 = vmatmul.bf16.gmra.mxu0 %v1102
        %v1280 = vpop.f32.mrf.mxu0
        %v1281 = vadd.f32 %v1137, %v1280
        %v1282 = vpop.f32.mrf.mxu0
        %v1283 = vadd.f32 %v1137, %v1282
        %1284 = vdwg.mxu0
        %1285 = vmatpush.bf16.msra.mxu0 %v1245
        %1286 = vmatpush.bf16.msra.mxu0 %v1242
        %1287 = vmatpush.bf16.msra.mxu0 %v1239
        %1288 = vmatpush.bf16.msra.mxu0 %v1236
        %1289 = vmatpush.bf16.msra.mxu0 %v1233
        %1290 = vmatpush.bf16.msra.mxu0 %v1230
        %1291 = vmatpush.bf16.msra.mxu0 %v1227
        %1292 = vmatpush.bf16.msra.mxu0 %v1224
        %1293 = vmatmul.bf16.gmra.mxu0 %v1102
        %v1294 = vpop.f32.mrf.mxu0
        %v1295 = vadd.f32 %v1138, %v1294
        %v1296 = vpop.f32.mrf.mxu0
        %v1297 = vadd.f32 %v1138, %v1296
        %1298 = vdwg.mxu0
        %1299 = vmatpush.bf16.msra.mxu0 %v1246
        %1300 = vmatpush.bf16.msra.mxu0 %v1243
        %1301 = vmatpush.bf16.msra.mxu0 %v1240
        %1302 = vmatpush.bf16.msra.mxu0 %v1237
        %1303 = vmatpush.bf16.msra.mxu0 %v1234
        %1304 = vmatpush.bf16.msra.mxu0 %v1231
        %1305 = vmatpush.bf16.msra.mxu0 %v1228
        %1306 = vmatpush.bf16.msra.mxu0 %v1225
        %1307 = vmatmul.bf16.gmra.mxu0 %v1102
        %v1308 = vpop.f32.mrf.mxu0
        %v1309 = vadd.f32 %v1139, %v1308
        %v1310 = vpop.f32.mrf.mxu0
        %v1311 = vadd.f32 %v1139, %v1310
        %1312 = vdwg.mxu0
        %v1313 = vld [vmem:[%s973] sm:$0xff]
        %v1314 = vld [vmem:[%s973 + $0x8] sm:$0xff]
        %vm1315 = vcmask 261120
        %v1317 = vsel %vm1315, %v1281, 0
        %v1320 = vsel %vm1315, %v1283, 0
        %v1323 = vsel %vm1315, %v1295, 0
        %v1326 = vsel %vm1315, %v1297, 0
        %1328 = vmatpush.xpose.msra.mxu0 0.0
        %1329 = vmatpush.xpose.msra.mxu0 0.0
        %1330 = vmatpush.xpose.msra.mxu0 0.0
        %1331 = vmatpush.xpose.msra.mxu0 0.0
        %1332 = vmatpush.xpose.msra.mxu0 0.0
        %1333 = vmatpush.xpose.msra.mxu0 0.0
        %1334 = vmatpush.xpose.msra.mxu0 0.0
        %1335 = vmatpush.xpose.msra.mxu0 0.0
        %1336 = vmatpush.xpose.msra.mxu0 0.0
        %1337 = vmatpush.xpose.msra.mxu0 0.0
        %1338 = vmatpush.xpose.msra.mxu0 0.0
        %1339 = vmatpush.xpose.msra.mxu0 0.0
        %1340 = vmatpush.xpose.msra.mxu0 0.0
        %1341 = vmatpush.xpose.msra.mxu0 0.0
        %1342 = vmatpush.xpose.msra.mxu0 %v1326
        %1343 = vmatpush.xpose.msra.mxu0 %v1323
        %1344 = vmatmul.f32.gmra.mxu0 %v1317
        %v1345 = vpop.f32.mrf.mxu0
        %v1346 = vadd.f32 %v1313, %v1345
        %1347 = vmatmul.f32.gmra.mxu0 %v1320
        %v1348 = vpop.f32.mrf.mxu0
        %v1349 = vadd.f32 %v1314, %v1348
        %1350 = vdwg.mxu0
        %vm1351 = vcmask 130048
        %v1352 = vsel %vm1351, %v1346, -inf
        %1353 = vmax.xlane.f32.xlu0 %v1352
        %v1354 = vpop.xlane.xlu0 %1353
        %v1355 = vsel %vm1351, %v1349, -inf
        %1356 = vmax.xlane.f32.xlu0 %v1355
        %v1357 = vpop.xlane.xlu0 %1356
        %v1358 = vsub.f32 %v1346, %v1354
        %v1359 = vsub.f32 %v1349, %v1357
        %v1360 = vmul.f32 %v1358, 1.442695
        %v1361 = vpow.pop %v1360
        %v1362 = vmul.f32 %v1359, 1.442695
        %v1363 = vpow.pop %v1362
        %v1364 = vsel %vm1351, %v1361, 0.0
        %1365 = vadd.xlane.f32.xlu0 %v1364
        %v1366 = vpop.xlane.xlu0 %1365
        %v1367 = vsel %vm1351, %v1363, 0.0
        %1368 = vadd.xlane.f32.xlu0 %v1367
        %v1369 = vpop.xlane.xlu0 %1368
        %v1370 = vrcp.pop %v1366
        %v1371 = vrcp.pop %v1369
        %v1372 = vmul.f32 %v1361, %v1370
        %v1373 = vmul.f32 %v1363, %v1371
        %v1375 = vsel %vm1351, %v1372, 0
        %v1378 = vsel %vm1351, %v1373, 0
        %1380 = vmatpush.msra.mxu0 0.0
        %1381 = vmatpush.msra.mxu0 0.0
        %1382 = vmatpush.msra.mxu0 0.0
        %1383 = vmatpush.msra.mxu0 0.0
        %1384 = vmatpush.msra.mxu0 0.0
        %1385 = vmatpush.msra.mxu0 0.0
        %1386 = vmatpush.msra.mxu0 0.0
        %1387 = vmatpush.msra.mxu0 0.0
        %1388 = vmatpush.msra.mxu0 0.0
        %1389 = vmatpush.msra.mxu0 0.0
        %1390 = vmatpush.msra.mxu0 0.0
        %1391 = vmatpush.msra.mxu0 0.0
        %1392 = vmatpush.msra.mxu0 0.0
        %1393 = vmatpush.msra.mxu0 0.0
        %1394 = vmatpush.msra.mxu0 %v1311
        %1395 = vmatpush.msra.mxu0 %v1309
        %1396 = vmatmul.f32.gmra.mxu0 %v1375
        %v1397 = vpop.f32.mrf.mxu0
        %v1398 = vadd.f32 0.0, %v1397
        %1399 = vmatmul.f32.gmra.mxu0 %v1378
        %v1400 = vpop.f32.mrf.mxu0
        %v1401 = vadd.f32 0.0, %v1400
        %1402 = vdwg.mxu0
        %1403 = vrot.lane.b32.xlu0 %v1281, 96
        %v1404 = vpop.permute.xlu0 %1403
        %1405 = vrot.lane.b32.xlu0 %v1283, 96
        %v1406 = vpop.permute.xlu0 %1405
        %1407 = vrot.lane.b32.xlu0 %v1295, 96
        %v1408 = vpop.permute.xlu0 %1407
        %1409 = vrot.lane.b32.xlu0 %v1297, 96
        %v1410 = vpop.permute.xlu0 %1409
        %v1411 = vsel %vm1315, %v1404, 0
        %v1413 = vsel %vm1315, %v1406, 0
        %v1415 = vsel %vm1315, %v1408, 0
        %v1417 = vsel %vm1315, %v1410, 0
        %1419 = vmatpush.xpose.msra.mxu0 0.0
        %1420 = vmatpush.xpose.msra.mxu0 0.0
        %1421 = vmatpush.xpose.msra.mxu0 0.0
        %1422 = vmatpush.xpose.msra.mxu0 0.0
        %1423 = vmatpush.xpose.msra.mxu0 0.0
        %1424 = vmatpush.xpose.msra.mxu0 0.0
        %1425 = vmatpush.xpose.msra.mxu0 0.0
        %1426 = vmatpush.xpose.msra.mxu0 0.0
        %1427 = vmatpush.xpose.msra.mxu0 0.0
        %1428 = vmatpush.xpose.msra.mxu0 0.0
        %1429 = vmatpush.xpose.msra.mxu0 0.0
        %1430 = vmatpush.xpose.msra.mxu0 0.0
        %1431 = vmatpush.xpose.msra.mxu0 0.0
        %1432 = vmatpush.xpose.msra.mxu0 0.0
        %1433 = vmatpush.xpose.msra.mxu0 %v1417
        %1434 = vmatpush.xpose.msra.mxu0 %v1415
        %1435 = vmatmul.f32.gmra.mxu0 %v1411
        %v1436 = vpop.f32.mrf.mxu0
        %v1437 = vadd.f32 %v1313, %v1436
        %1438 = vmatmul.f32.gmra.mxu0 %v1413
        %v1439 = vpop.f32.mrf.mxu0
        %v1440 = vadd.f32 %v1314, %v1439
        %1441 = vdwg.mxu0
        %v1442 = vsel %vm1351, %v1437, -inf
        %1443 = vmax.xlane.f32.xlu0 %v1442
        %v1444 = vpop.xlane.xlu0 %1443
        %v1445 = vsel %vm1351, %v1440, -inf
        %1446 = vmax.xlane.f32.xlu0 %v1445
        %v1447 = vpop.xlane.xlu0 %1446
        %v1448 = vsub.f32 %v1437, %v1444
        %v1449 = vsub.f32 %v1440, %v1447
        %v1450 = vmul.f32 %v1448, 1.442695
        %v1451 = vpow.pop %v1450
        %v1452 = vmul.f32 %v1449, 1.442695
        %v1453 = vpow.pop %v1452
        %v1454 = vsel %vm1351, %v1451, 0.0
        %1455 = vadd.xlane.f32.xlu0 %v1454
        %v1456 = vpop.xlane.xlu0 %1455
        %v1457 = vsel %vm1351, %v1453, 0.0
        %1458 = vadd.xlane.f32.xlu0 %v1457
        %v1459 = vpop.xlane.xlu0 %1458
        %v1460 = vrcp.pop %v1456
        %v1461 = vrcp.pop %v1459
        %v1462 = vmul.f32 %v1451, %v1460
        %v1463 = vmul.f32 %v1453, %v1461
        %1466 = vrot.lane.b32.xlu0 %v1309, 96
        %v1467 = vpop.permute.xlu0 %1466
        %1468 = vrot.lane.b32.xlu0 %v1311, 96
        %v1469 = vpop.permute.xlu0 %1468
        %v1473 = vsel %vm1351, %v1462, 0
        %v1476 = vsel %vm1351, %v1463, 0
        %1478 = vmatpush.msra.mxu0 0.0
        %1479 = vmatpush.msra.mxu0 0.0
        %1480 = vmatpush.msra.mxu0 0.0
        %1481 = vmatpush.msra.mxu0 0.0
        %1482 = vmatpush.msra.mxu0 0.0
        %1483 = vmatpush.msra.mxu0 0.0
        %1484 = vmatpush.msra.mxu0 0.0
        %1485 = vmatpush.msra.mxu0 0.0
        %1486 = vmatpush.msra.mxu0 0.0
        %1487 = vmatpush.msra.mxu0 0.0
        %1488 = vmatpush.msra.mxu0 0.0
        %1489 = vmatpush.msra.mxu0 0.0
        %1490 = vmatpush.msra.mxu0 0.0
        %1491 = vmatpush.msra.mxu0 0.0
        %1492 = vmatpush.msra.mxu0 %v1469
        %1493 = vmatpush.msra.mxu0 %v1467
        %1494 = vmatmul.f32.gmra.mxu0 %v1473
        %v1495 = vpop.f32.mrf.mxu0
        %v1496 = vadd.f32 0.0, %v1495
        %1497 = vmatmul.f32.gmra.mxu0 %v1476
        %v1498 = vpop.f32.mrf.mxu0
        %v1499 = vadd.f32 0.0, %v1498
        %1500 = vdwg.mxu0
        %1501 = vrot.lane.b32.xlu0 %v1281, 64
        %v1502 = vpop.permute.xlu0 %1501
        %1503 = vrot.lane.b32.xlu0 %v1283, 64
        %v1504 = vpop.permute.xlu0 %1503
        %1505 = vrot.lane.b32.xlu0 %v1295, 64
        %v1506 = vpop.permute.xlu0 %1505
        %1507 = vrot.lane.b32.xlu0 %v1297, 64
        %v1508 = vpop.permute.xlu0 %1507
        %v1509 = vsel %vm1315, %v1502, 0
        %v1511 = vsel %vm1315, %v1504, 0
        %v1513 = vsel %vm1315, %v1506, 0
        %v1515 = vsel %vm1315, %v1508, 0
        %1517 = vmatpush.xpose.msra.mxu0 0.0
        %1518 = vmatpush.xpose.msra.mxu0 0.0
        %1519 = vmatpush.xpose.msra.mxu0 0.0
        %1520 = vmatpush.xpose.msra.mxu0 0.0
        %1521 = vmatpush.xpose.msra.mxu0 0.0
        %1522 = vmatpush.xpose.msra.mxu0 0.0
        %1523 = vmatpush.xpose.msra.mxu0 0.0
        %1524 = vmatpush.xpose.msra.mxu0 0.0
        %1525 = vmatpush.xpose.msra.mxu0 0.0
        %1526 = vmatpush.xpose.msra.mxu0 0.0
        %1527 = vmatpush.xpose.msra.mxu0 0.0
        %1528 = vmatpush.xpose.msra.mxu0 0.0
        %1529 = vmatpush.xpose.msra.mxu0 0.0
        %1530 = vmatpush.xpose.msra.mxu0 0.0
        %1531 = vmatpush.xpose.msra.mxu0 %v1515
        %1532 = vmatpush.xpose.msra.mxu0 %v1513
        %1533 = vmatmul.f32.gmra.mxu0 %v1509
        %v1534 = vpop.f32.mrf.mxu0
        %v1535 = vadd.f32 %v1313, %v1534
        %1536 = vmatmul.f32.gmra.mxu0 %v1511
        %v1537 = vpop.f32.mrf.mxu0
        %v1538 = vadd.f32 %v1314, %v1537
        %1539 = vdwg.mxu0
        %v1540 = vsel %vm1351, %v1535, -inf
        %1541 = vmax.xlane.f32.xlu0 %v1540
        %v1542 = vpop.xlane.xlu0 %1541
        %v1543 = vsel %vm1351, %v1538, -inf
        %1544 = vmax.xlane.f32.xlu0 %v1543
        %v1545 = vpop.xlane.xlu0 %1544
        %v1546 = vsub.f32 %v1535, %v1542
        %v1547 = vsub.f32 %v1538, %v1545
        %v1548 = vmul.f32 %v1546, 1.442695
        %v1549 = vpow.pop %v1548
        %v1550 = vmul.f32 %v1547, 1.442695
        %v1551 = vpow.pop %v1550
        %v1552 = vsel %vm1351, %v1549, 0.0
        %1553 = vadd.xlane.f32.xlu0 %v1552
        %v1554 = vpop.xlane.xlu0 %1553
        %v1555 = vsel %vm1351, %v1551, 0.0
        %1556 = vadd.xlane.f32.xlu0 %v1555
        %v1557 = vpop.xlane.xlu0 %1556
        %v1558 = vrcp.pop %v1554
        %v1559 = vrcp.pop %v1557
        %v1560 = vmul.f32 %v1549, %v1558
        %v1561 = vmul.f32 %v1551, %v1559
        %1562 = vrot.lane.b32.xlu0 %v1309, 64
        %v1563 = vpop.permute.xlu0 %1562
        %1564 = vrot.lane.b32.xlu0 %v1311, 64
        %v1565 = vpop.permute.xlu0 %1564
        %v1569 = vsel %vm1351, %v1560, 0
        %v1572 = vsel %vm1351, %v1561, 0
        %1574 = vmatpush.msra.mxu0 0.0
        %1575 = vmatpush.msra.mxu0 0.0
        %1576 = vmatpush.msra.mxu0 0.0
        %1577 = vmatpush.msra.mxu0 0.0
        %1578 = vmatpush.msra.mxu0 0.0
        %1579 = vmatpush.msra.mxu0 0.0
        %1580 = vmatpush.msra.mxu0 0.0
        %1581 = vmatpush.msra.mxu0 0.0
        %1582 = vmatpush.msra.mxu0 0.0
        %1583 = vmatpush.msra.mxu0 0.0
        %1584 = vmatpush.msra.mxu0 0.0
        %1585 = vmatpush.msra.mxu0 0.0
        %1586 = vmatpush.msra.mxu0 0.0
        %1587 = vmatpush.msra.mxu0 0.0
        %1588 = vmatpush.msra.mxu0 %v1565
        %1589 = vmatpush.msra.mxu0 %v1563
        %1590 = vmatmul.f32.gmra.mxu0 %v1569
        %v1591 = vpop.f32.mrf.mxu0
        %v1592 = vadd.f32 0.0, %v1591
        %1593 = vmatmul.f32.gmra.mxu0 %v1572
        %v1594 = vpop.f32.mrf.mxu0
        %v1595 = vadd.f32 0.0, %v1594
        %1596 = vdwg.mxu0
        %1597 = vrot.lane.b32.xlu0 %v1281, 32
        %v1598 = vpop.permute.xlu0 %1597
        %1599 = vrot.lane.b32.xlu0 %v1283, 32
        %v1600 = vpop.permute.xlu0 %1599
        %1601 = vrot.lane.b32.xlu0 %v1295, 32
        %v1602 = vpop.permute.xlu0 %1601
        %1603 = vrot.lane.b32.xlu0 %v1297, 32
        %v1604 = vpop.permute.xlu0 %1603
        %v1605 = vsel %vm1315, %v1598, 0
        %v1607 = vsel %vm1315, %v1600, 0
        %v1609 = vsel %vm1315, %v1602, 0
        %v1611 = vsel %vm1315, %v1604, 0
        %1613 = vmatpush.xpose.msra.mxu0 0.0
        %1614 = vmatpush.xpose.msra.mxu0 0.0
        %1615 = vmatpush.xpose.msra.mxu0 0.0
        %1616 = vmatpush.xpose.msra.mxu0 0.0
        %1617 = vmatpush.xpose.msra.mxu0 0.0
        %1618 = vmatpush.xpose.msra.mxu0 0.0
        %1619 = vmatpush.xpose.msra.mxu0 0.0
        %1620 = vmatpush.xpose.msra.mxu0 0.0
        %1621 = vmatpush.xpose.msra.mxu0 0.0
        %1622 = vmatpush.xpose.msra.mxu0 0.0
        %1623 = vmatpush.xpose.msra.mxu0 0.0
        %1624 = vmatpush.xpose.msra.mxu0 0.0
        %1625 = vmatpush.xpose.msra.mxu0 0.0
        %1626 = vmatpush.xpose.msra.mxu0 0.0
        %1627 = vmatpush.xpose.msra.mxu0 %v1611
        %1628 = vmatpush.xpose.msra.mxu0 %v1609
        %1629 = vmatmul.f32.gmra.mxu0 %v1605
        %v1630 = vpop.f32.mrf.mxu0
        %v1631 = vadd.f32 %v1313, %v1630
        %1632 = vmatmul.f32.gmra.mxu0 %v1607
        %v1633 = vpop.f32.mrf.mxu0
        %v1634 = vadd.f32 %v1314, %v1633
        %1635 = vdwg.mxu0
        %v1636 = vsel %vm1351, %v1631, -inf
        %1637 = vmax.xlane.f32.xlu0 %v1636
        %v1638 = vpop.xlane.xlu0 %1637
        %v1639 = vsel %vm1351, %v1634, -inf
        %1640 = vmax.xlane.f32.xlu0 %v1639
        %v1641 = vpop.xlane.xlu0 %1640
        %v1642 = vsub.f32 %v1631, %v1638
        %v1643 = vsub.f32 %v1634, %v1641
        %v1644 = vmul.f32 %v1642, 1.442695
        %v1645 = vpow.pop %v1644
        %v1646 = vmul.f32 %v1643, 1.442695
        %v1647 = vpow.pop %v1646
        %v1648 = vsel %vm1351, %v1645, 0.0
        %1649 = vadd.xlane.f32.xlu0 %v1648
        %v1650 = vpop.xlane.xlu0 %1649
        %v1651 = vsel %vm1351, %v1647, 0.0
        %1652 = vadd.xlane.f32.xlu0 %v1651
        %v1653 = vpop.xlane.xlu0 %1652
        %v1654 = vrcp.pop %v1650
        %v1655 = vrcp.pop %v1653
        %v1656 = vmul.f32 %v1645, %v1654
        %v1657 = vmul.f32 %v1647, %v1655
        %1658 = vrot.lane.b32.xlu0 %v1309, 32
        %v1659 = vpop.permute.xlu0 %1658
        %1660 = vrot.lane.b32.xlu0 %v1311, 32
        %v1661 = vpop.permute.xlu0 %1660
        %v1665 = vsel %vm1351, %v1656, 0
        %v1668 = vsel %vm1351, %v1657, 0
        %1670 = vmatpush.msra.mxu0 0.0
        %1671 = vmatpush.msra.mxu0 0.0
        %1672 = vmatpush.msra.mxu0 0.0
        %1673 = vmatpush.msra.mxu0 0.0
        %1674 = vmatpush.msra.mxu0 0.0
        %1675 = vmatpush.msra.mxu0 0.0
        %1676 = vmatpush.msra.mxu0 0.0
        %1677 = vmatpush.msra.mxu0 0.0
        %1678 = vmatpush.msra.mxu0 0.0
        %1679 = vmatpush.msra.mxu0 0.0
        %1680 = vmatpush.msra.mxu0 0.0
        %1681 = vmatpush.msra.mxu0 0.0
        %1682 = vmatpush.msra.mxu0 0.0
        %1683 = vmatpush.msra.mxu0 0.0
        %1684 = vmatpush.msra.mxu0 %v1661
        %1685 = vmatpush.msra.mxu0 %v1659
        %1686 = vmatmul.f32.gmra.mxu0 %v1665
        %v1687 = vpop.f32.mrf.mxu0
        %v1688 = vadd.f32 0.0, %v1687
        %1689 = vmatmul.f32.gmra.mxu0 %v1668
        %v1690 = vpop.f32.mrf.mxu0
        %v1691 = vadd.f32 0.0, %v1690
        %1692 = vdwg.mxu0
        %1695 = vrot.lane.b32.xlu0 %v1496, 32
        %v1696 = vpop.permute.xlu0 %1695
        %1697 = vrot.lane.b32.xlu0 %v1499, 32
        %v1698 = vpop.permute.xlu0 %1697
        %1703 = vrot.lane.b32.xlu0 %v1592, 64
        %v1704 = vpop.permute.xlu0 %1703
        %1705 = vrot.lane.b32.xlu0 %v1595, 64
        %v1706 = vpop.permute.xlu0 %1705
        %1711 = vrot.lane.b32.xlu0 %v1688, 96
        %v1712 = vpop.permute.xlu0 %1711
        %1713 = vrot.lane.b32.xlu0 %v1691, 96
        %v1714 = vpop.permute.xlu0 %1713
        %v1717 = vsel %vm1315, %v1398, %v1696
        %v1718 = vsel %vm1315, %v1401, %v1698
        %vm1719 = vcmask 523264
        %v1720 = vsel %vm1719, %v1717, %v1704
        %v1721 = vsel %vm1719, %v1718, %v1706
        %vm1722 = vcmask 785408
        %v1723 = vsel %vm1722, %v1720, %v1712
        %v1724 = vsel %vm1722, %v1721, %v1714
        %v1725 = vpack.c.bf16 %v1724, %v1723
        %v1726 = vld [vmem:[%s826] sm:$0xf]
        %v1727 = vld [vmem:[%s826 + $0x4] sm:$0xf]
        %v1728 = vld [vmem:[%s826 + $0x8] sm:$0xf]
        %v1729 = vld [vmem:[%s826 + $0xc] sm:$0xf]
        %v1730 = vld [vmem:[%s826 + $0x10] sm:$0xf]
        %v1731 = vld [vmem:[%s826 + $0x14] sm:$0xf]
        %v1732 = vld [vmem:[%s826 + $0x18] sm:$0xf]
        %v1733 = vld [vmem:[%s826 + $0x1c] sm:$0xf]
        %v1734 = vld [vmem:[%s826 + $0x20] sm:$0xf]
        %v1735 = vld [vmem:[%s826 + $0x24] sm:$0xf]
        %v1736 = vld [vmem:[%s826 + $0x28] sm:$0xf]
        %v1737 = vld [vmem:[%s826 + $0x2c] sm:$0xf]
        %v1738 = vld [vmem:[%s826 + $0x30] sm:$0xf]
        %v1739 = vld [vmem:[%s826 + $0x34] sm:$0xf]
        %v1740 = vld [vmem:[%s826 + $0x38] sm:$0xf]
        %v1741 = vld [vmem:[%s826 + $0x3c] sm:$0xf]
        %v1742 = vld [vmem:[%s976] sm:$0x1]
        %v1744 = vperm.slane %v1742, 0
        %v1762 = vunpack.c.l.b16 %v1726
        %v1763 = vunpack.c.l.b16 %v1727
        %v1764 = vunpack.c.l.b16 %v1728
        %v1765 = vunpack.c.l.b16 %v1729
        %v1766 = vunpack.c.l.b16 %v1730
        %v1767 = vunpack.c.l.b16 %v1731
        %v1768 = vunpack.c.l.b16 %v1732
        %v1769 = vunpack.c.l.b16 %v1733
        %v1770 = vunpack.c.l.b16 %v1734
        %v1771 = vunpack.c.l.b16 %v1735
        %v1772 = vunpack.c.l.b16 %v1736
        %v1773 = vunpack.c.l.b16 %v1737
        %v1774 = vunpack.c.l.b16 %v1738
        %v1775 = vunpack.c.l.b16 %v1739
        %v1776 = vunpack.c.l.b16 %v1740
        %v1777 = vunpack.c.l.b16 %v1741
        %v1778 = vpack.c.b16 %v1763, %v1762
        %v1779 = vpack.c.b16 %v1765, %v1764
        %v1780 = vpack.c.b16 %v1767, %v1766
        %v1781 = vpack.c.b16 %v1769, %v1768
        %v1782 = vpack.c.b16 %v1771, %v1770
        %v1783 = vpack.c.b16 %v1773, %v1772
        %v1784 = vpack.c.b16 %v1775, %v1774
        %v1785 = vpack.c.b16 %v1777, %v1776
        %1794 = vmatpush.bf16.msra.mxu0 %v1785
        %1795 = vmatpush.bf16.msra.mxu0 %v1784
        %1796 = vmatpush.bf16.msra.mxu0 %v1783
        %1797 = vmatpush.bf16.msra.mxu0 %v1782
        %1798 = vmatpush.bf16.msra.mxu0 %v1781
        %1799 = vmatpush.bf16.msra.mxu0 %v1780
        %1800 = vmatpush.bf16.msra.mxu0 %v1779
        %1801 = vmatpush.bf16.msra.mxu0 %v1778
        %1802 = vmatmul.bf16.gmra.mxu0 %v1725
        %v1803 = vpop.f32.mrf.mxu0
        %v1804 = vadd.f32 %v1744, %v1803
        %v1805 = vpop.f32.mrf.mxu0
        %v1806 = vadd.f32 %v1744, %v1805
        %1807 = vdwg.mxu0
        %v1808 = vadd.f32 %v1041, %v1804
        %v1809 = vadd.f32 %v1042, %v1806
        %v1810 = vld [vmem:[%s835] sm:$0x1]
        %v1811 = vld [vmem:[%s979] sm:$0x1]
        %1812 = vadd.xlane.f32.xlu0 %v1808
        %v1813 = vpop.xlane.xlu0 %1812
        %1814 = vadd.xlane.f32.xlu0 %v1809
        %v1815 = vpop.xlane.xlu0 %1814
        %v1816 = vmul.f32 %v1813, %v1055
        %v1817 = vmul.f32 %v1815, %v1055
        %v1818 = vsub.f32 %v1808, %v1816
        %v1819 = vsub.f32 %v1809, %v1817
        %v1820 = vmul.f32 %v1818, %v1818
        %v1821 = vmul.f32 %v1819, %v1819
        %1822 = vadd.xlane.f32.xlu0 %v1820
        %v1823 = vpop.xlane.xlu0 %1822
        %1824 = vadd.xlane.f32.xlu0 %v1821
        %v1825 = vpop.xlane.xlu0 %1824
        %v1826 = vmul.f32 %v1823, %v1055
        %v1827 = vmul.f32 %v1825, %v1055
        %v1828 = vadd.f32 %v1826, 1e-05
        %v1829 = vadd.f32 %v1827, 1e-05
        %v1830 = vrsqrt.pop %v1828
        %v1831 = vmul.f32 %v1830, %v1828
        %v1832 = vmul.f32 %v1831, %v1830
        %v1833 = vmul.f32 0.5, %v1832
        %v1834 = vsub.f32 1.5, %v1833
        %v1835 = vmul.f32 %v1830, %v1834
        %vm1836 = vweird.f32 %v1828
        %vm1837 = vweird.f32 %v1830
        %vm1838 = vmor %vm1836, %vm1837
        %v1839 = vsel %vm1838, %v1830, %v1835
        %v1840 = vrsqrt.pop %v1829
        %v1841 = vmul.f32 %v1840, %v1829
        %v1842 = vmul.f32 %v1841, %v1840
        %v1843 = vmul.f32 0.5, %v1842
        %v1844 = vsub.f32 1.5, %v1843
        %v1845 = vmul.f32 %v1840, %v1844
        %vm1846 = vweird.f32 %v1829
        %vm1847 = vweird.f32 %v1840
        %vm1848 = vmor %vm1846, %vm1847
        %v1849 = vsel %vm1848, %v1840, %v1845
        %v1850 = vmul.f32 %v1818, %v1839
        %v1851 = vmul.f32 %v1819, %v1849
        %v1853 = vperm.slane %v1810, 0
        %v1855 = vmul.f32 %v1850, %v1853
        %v1856 = vmul.f32 %v1851, %v1853
        %v1858 = vperm.slane %v1811, 0
        %v1860 = vadd.f32 %v1855, %v1858
        %v1861 = vadd.f32 %v1856, %v1858
        %v1862 = vpack.c.bf16 %v1861, %v1860
        %v1863 = vld [vmem:[%s845] sm:$0xff]
        %v1864 = vld [vmem:[%s845 + $0x8] sm:$0xff]
        %v1865 = vld [vmem:[%s845 + $0x10] sm:$0xff]
        %v1866 = vld [vmem:[%s845 + $0x18] sm:$0xff]
        %v1867 = vld [vmem:[%s845 + $0x20] sm:$0xff]
        %v1868 = vld [vmem:[%s845 + $0x28] sm:$0xff]
        %v1869 = vld [vmem:[%s845 + $0x30] sm:$0xff]
        %v1870 = vld [vmem:[%s845 + $0x38] sm:$0xff]
        %v1871 = vld [vmem:[%s845 + $0x40] sm:$0xff]
        %v1872 = vld [vmem:[%s845 + $0x48] sm:$0xff]
        %v1873 = vld [vmem:[%s845 + $0x50] sm:$0xff]
        %v1874 = vld [vmem:[%s845 + $0x58] sm:$0xff]
        %v1875 = vld [vmem:[%s845 + $0x60] sm:$0xff]
        %v1876 = vld [vmem:[%s845 + $0x68] sm:$0xff]
        %v1877 = vld [vmem:[%s845 + $0x70] sm:$0xff]
        %v1878 = vld [vmem:[%s845 + $0x78] sm:$0xff]
        %v1879 = vld [vmem:[%s845 + $0x80] sm:$0xff]
        %v1880 = vld [vmem:[%s845 + $0x88] sm:$0xff]
        %v1881 = vld [vmem:[%s845 + $0x90] sm:$0xff]
        %v1882 = vld [vmem:[%s845 + $0x98] sm:$0xff]
        %v1883 = vld [vmem:[%s845 + $0xa0] sm:$0xff]
        %v1884 = vld [vmem:[%s845 + $0xa8] sm:$0xff]
        %v1885 = vld [vmem:[%s845 + $0xb0] sm:$0xff]
        %v1886 = vld [vmem:[%s845 + $0xb8] sm:$0xff]
        %v1887 = vld [vmem:[%s845 + $0xc0] sm:$0xff]
        %v1888 = vld [vmem:[%s845 + $0xc8] sm:$0xff]
        %v1889 = vld [vmem:[%s845 + $0xd0] sm:$0xff]
        %v1890 = vld [vmem:[%s845 + $0xd8] sm:$0xff]
        %v1891 = vld [vmem:[%s845 + $0xe0] sm:$0xff]
        %v1892 = vld [vmem:[%s845 + $0xe8] sm:$0xff]
        %v1893 = vld [vmem:[%s845 + $0xf0] sm:$0xff]
        %v1894 = vld [vmem:[%s845 + $0xf8] sm:$0xff]
        %v1895 = vld [vmem:[%s983] sm:$0xf]
        %v1897 = vperm.slane %v1895, 0
        %v1898 = vperm.slane %v1895, 1
        %v1899 = vperm.slane %v1895, 2
        %v1900 = vperm.slane %v1895, 3
        %v1937 = vunpack.c.l.b16 %v1863
        %v1938 = vunpack.c.h.b16 %v1863
        %v1939 = vunpack.c.l.b16 %v1864
        %v1940 = vunpack.c.h.b16 %v1864
        %v1941 = vunpack.c.l.b16 %v1865
        %v1942 = vunpack.c.h.b16 %v1865
        %v1943 = vunpack.c.l.b16 %v1866
        %v1944 = vunpack.c.h.b16 %v1866
        %v1945 = vunpack.c.l.b16 %v1867
        %v1946 = vunpack.c.h.b16 %v1867
        %v1947 = vunpack.c.l.b16 %v1868
        %v1948 = vunpack.c.h.b16 %v1868
        %v1949 = vunpack.c.l.b16 %v1869
        %v1950 = vunpack.c.h.b16 %v1869
        %v1951 = vunpack.c.l.b16 %v1870
        %v1952 = vunpack.c.h.b16 %v1870
        %v1953 = vunpack.c.l.b16 %v1871
        %v1954 = vunpack.c.h.b16 %v1871
        %v1955 = vunpack.c.l.b16 %v1872
        %v1956 = vunpack.c.h.b16 %v1872
        %v1957 = vunpack.c.l.b16 %v1873
        %v1958 = vunpack.c.h.b16 %v1873
        %v1959 = vunpack.c.l.b16 %v1874
        %v1960 = vunpack.c.h.b16 %v1874
        %v1961 = vunpack.c.l.b16 %v1875
        %v1962 = vunpack.c.h.b16 %v1875
        %v1963 = vunpack.c.l.b16 %v1876
        %v1964 = vunpack.c.h.b16 %v1876
        %v1965 = vunpack.c.l.b16 %v1877
        %v1966 = vunpack.c.h.b16 %v1877
        %v1967 = vunpack.c.l.b16 %v1878
        %v1968 = vunpack.c.h.b16 %v1878
        %v1969 = vunpack.c.l.b16 %v1879
        %v1970 = vunpack.c.h.b16 %v1879
        %v1971 = vunpack.c.l.b16 %v1880
        %v1972 = vunpack.c.h.b16 %v1880
        %v1973 = vunpack.c.l.b16 %v1881
        %v1974 = vunpack.c.h.b16 %v1881
        %v1975 = vunpack.c.l.b16 %v1882
        %v1976 = vunpack.c.h.b16 %v1882
        %v1977 = vunpack.c.l.b16 %v1883
        %v1978 = vunpack.c.h.b16 %v1883
        %v1979 = vunpack.c.l.b16 %v1884
        %v1980 = vunpack.c.h.b16 %v1884
        %v1981 = vunpack.c.l.b16 %v1885
        %v1982 = vunpack.c.h.b16 %v1885
        %v1983 = vunpack.c.l.b16 %v1886
        %v1984 = vunpack.c.h.b16 %v1886
        %v1985 = vunpack.c.l.b16 %v1887
        %v1986 = vunpack.c.h.b16 %v1887
        %v1987 = vunpack.c.l.b16 %v1888
        %v1988 = vunpack.c.h.b16 %v1888
        %v1989 = vunpack.c.l.b16 %v1889
        %v1990 = vunpack.c.h.b16 %v1889
        %v1991 = vunpack.c.l.b16 %v1890
        %v1992 = vunpack.c.h.b16 %v1890
        %v1993 = vunpack.c.l.b16 %v1891
        %v1994 = vunpack.c.h.b16 %v1891
        %v1995 = vunpack.c.l.b16 %v1892
        %v1996 = vunpack.c.h.b16 %v1892
        %v1997 = vunpack.c.l.b16 %v1893
        %v1998 = vunpack.c.h.b16 %v1893
        %v1999 = vunpack.c.l.b16 %v1894
        %v2000 = vunpack.c.h.b16 %v1894
        %v2001 = vpack.c.b16 %v1941, %v1937
        %v2002 = vpack.c.b16 %v1942, %v1938
        %v2003 = vpack.c.b16 %v1943, %v1939
        %v2004 = vpack.c.b16 %v1944, %v1940
        %v2005 = vpack.c.b16 %v1949, %v1945
        %v2006 = vpack.c.b16 %v1950, %v1946
        %v2007 = vpack.c.b16 %v1951, %v1947
        %v2008 = vpack.c.b16 %v1952, %v1948
        %v2009 = vpack.c.b16 %v1957, %v1953
        %v2010 = vpack.c.b16 %v1958, %v1954
        %v2011 = vpack.c.b16 %v1959, %v1955
        %v2012 = vpack.c.b16 %v1960, %v1956
        %v2013 = vpack.c.b16 %v1965, %v1961
        %v2014 = vpack.c.b16 %v1966, %v1962
        %v2015 = vpack.c.b16 %v1967, %v1963
        %v2016 = vpack.c.b16 %v1968, %v1964
        %v2017 = vpack.c.b16 %v1973, %v1969
        %v2018 = vpack.c.b16 %v1974, %v1970
        %v2019 = vpack.c.b16 %v1975, %v1971
        %v2020 = vpack.c.b16 %v1976, %v1972
        %v2021 = vpack.c.b16 %v1981, %v1977
        %v2022 = vpack.c.b16 %v1982, %v1978
        %v2023 = vpack.c.b16 %v1983, %v1979
        %v2024 = vpack.c.b16 %v1984, %v1980
        %v2025 = vpack.c.b16 %v1989, %v1985
        %v2026 = vpack.c.b16 %v1990, %v1986
        %v2027 = vpack.c.b16 %v1991, %v1987
        %v2028 = vpack.c.b16 %v1992, %v1988
        %v2029 = vpack.c.b16 %v1997, %v1993
        %v2030 = vpack.c.b16 %v1998, %v1994
        %v2031 = vpack.c.b16 %v1999, %v1995
        %v2032 = vpack.c.b16 %v2000, %v1996
        %2065 = vmatpush.bf16.msra.mxu0 %v2029
        %2066 = vmatpush.bf16.msra.mxu0 %v2025
        %2067 = vmatpush.bf16.msra.mxu0 %v2021
        %2068 = vmatpush.bf16.msra.mxu0 %v2017
        %2069 = vmatpush.bf16.msra.mxu0 %v2013
        %2070 = vmatpush.bf16.msra.mxu0 %v2009
        %2071 = vmatpush.bf16.msra.mxu0 %v2005
        %2072 = vmatpush.bf16.msra.mxu0 %v2001
        %2073 = vmatmul.bf16.gmra.mxu0 %v1862
        %v2074 = vpop.f32.mrf.mxu0
        %v2075 = vadd.f32 %v1897, %v2074
        %v2076 = vpop.f32.mrf.mxu0
        %v2077 = vadd.f32 %v1897, %v2076
        %2078 = vdwg.mxu0
        %2079 = vmatpush.bf16.msra.mxu0 %v2030
        %2080 = vmatpush.bf16.msra.mxu0 %v2026
        %2081 = vmatpush.bf16.msra.mxu0 %v2022
        %2082 = vmatpush.bf16.msra.mxu0 %v2018
        %2083 = vmatpush.bf16.msra.mxu0 %v2014
        %2084 = vmatpush.bf16.msra.mxu0 %v2010
        %2085 = vmatpush.bf16.msra.mxu0 %v2006
        %2086 = vmatpush.bf16.msra.mxu0 %v2002
        %2087 = vmatmul.bf16.gmra.mxu0 %v1862
        %v2088 = vpop.f32.mrf.mxu0
        %v2089 = vadd.f32 %v1898, %v2088
        %v2090 = vpop.f32.mrf.mxu0
        %v2091 = vadd.f32 %v1898, %v2090
        %2092 = vdwg.mxu0
        %2093 = vmatpush.bf16.msra.mxu0 %v2031
        %2094 = vmatpush.bf16.msra.mxu0 %v2027
        %2095 = vmatpush.bf16.msra.mxu0 %v2023
        %2096 = vmatpush.bf16.msra.mxu0 %v2019
        %2097 = vmatpush.bf16.msra.mxu0 %v2015
        %2098 = vmatpush.bf16.msra.mxu0 %v2011
        %2099 = vmatpush.bf16.msra.mxu0 %v2007
        %2100 = vmatpush.bf16.msra.mxu0 %v2003
        %2101 = vmatmul.bf16.gmra.mxu0 %v1862
        %v2102 = vpop.f32.mrf.mxu0
        %v2103 = vadd.f32 %v1899, %v2102
        %v2104 = vpop.f32.mrf.mxu0
        %v2105 = vadd.f32 %v1899, %v2104
        %2106 = vdwg.mxu0
        %2107 = vmatpush.bf16.msra.mxu0 %v2032
        %2108 = vmatpush.bf16.msra.mxu0 %v2028
        %2109 = vmatpush.bf16.msra.mxu0 %v2024
        %2110 = vmatpush.bf16.msra.mxu0 %v2020
        %2111 = vmatpush.bf16.msra.mxu0 %v2016
        %2112 = vmatpush.bf16.msra.mxu0 %v2012
        %2113 = vmatpush.bf16.msra.mxu0 %v2008
        %2114 = vmatpush.bf16.msra.mxu0 %v2004
        %2115 = vmatmul.bf16.gmra.mxu0 %v1862
        %v2116 = vpop.f32.mrf.mxu0
        %v2117 = vadd.f32 %v1900, %v2116
        %v2118 = vpop.f32.mrf.mxu0
        %v2119 = vadd.f32 %v1900, %v2118
        %2120 = vdwg.mxu0
        %v2121 = vmul.f32 %v2075, 0.5
        %v2122 = vmul.f32 %v2089, 0.5
        %v2123 = vmul.f32 %v2103, 0.5
        %v2124 = vmul.f32 %v2117, 0.5
        %v2125 = vmul.f32 %v2077, 0.5
        %v2126 = vmul.f32 %v2091, 0.5
        %v2127 = vmul.f32 %v2105, 0.5
        %v2128 = vmul.f32 %v2119, 0.5
        %v2129 = vmul.f32 %v2075, 0.044715
        %v2130 = vmul.f32 %v2089, 0.044715
        %v2131 = vmul.f32 %v2103, 0.044715
        %v2132 = vmul.f32 %v2117, 0.044715
        %v2133 = vmul.f32 %v2077, 0.044715
        %v2134 = vmul.f32 %v2091, 0.044715
        %v2135 = vmul.f32 %v2105, 0.044715
        %v2136 = vmul.f32 %v2119, 0.044715
        %v2137 = vmul.f32 %v2129, %v2075
        %v2138 = vmul.f32 %v2130, %v2089
        %v2139 = vmul.f32 %v2131, %v2103
        %v2140 = vmul.f32 %v2132, %v2117
        %v2141 = vmul.f32 %v2133, %v2077
        %v2142 = vmul.f32 %v2134, %v2091
        %v2143 = vmul.f32 %v2135, %v2105
        %v2144 = vmul.f32 %v2136, %v2119
        %v2145 = vmul.f32 %v2137, %v2075
        %v2146 = vmul.f32 %v2138, %v2089
        %v2147 = vmul.f32 %v2139, %v2103
        %v2148 = vmul.f32 %v2140, %v2117
        %v2149 = vmul.f32 %v2141, %v2077
        %v2150 = vmul.f32 %v2142, %v2091
        %v2151 = vmul.f32 %v2143, %v2105
        %v2152 = vmul.f32 %v2144, %v2119
        %v2153 = vadd.f32 %v2075, %v2145
        %v2154 = vadd.f32 %v2089, %v2146
        %v2155 = vadd.f32 %v2103, %v2147
        %v2156 = vadd.f32 %v2117, %v2148
        %v2157 = vadd.f32 %v2077, %v2149
        %v2158 = vadd.f32 %v2091, %v2150
        %v2159 = vadd.f32 %v2105, %v2151
        %v2160 = vadd.f32 %v2119, %v2152
        %v2161 = vmul.f32 %v2153, 0.7978846
        %v2162 = vmul.f32 %v2154, 0.7978846
        %v2163 = vmul.f32 %v2155, 0.7978846
        %v2164 = vmul.f32 %v2156, 0.7978846
        %v2165 = vmul.f32 %v2157, 0.7978846
        %v2166 = vmul.f32 %v2158, 0.7978846
        %v2167 = vmul.f32 %v2159, 0.7978846
        %v2168 = vmul.f32 %v2160, 0.7978846
        %v2169 = vtanh.pop %v2161
        %v2170 = vtanh.pop %v2162
        %v2171 = vtanh.pop %v2163
        %v2172 = vtanh.pop %v2164
        %v2173 = vtanh.pop %v2165
        %v2174 = vtanh.pop %v2166
        %v2175 = vtanh.pop %v2167
        %v2176 = vtanh.pop %v2168
        %v2177 = vadd.f32 %v2169, 1.0
        %v2178 = vadd.f32 %v2170, 1.0
        %v2179 = vadd.f32 %v2171, 1.0
        %v2180 = vadd.f32 %v2172, 1.0
        %v2181 = vadd.f32 %v2173, 1.0
        %v2182 = vadd.f32 %v2174, 1.0
        %v2183 = vadd.f32 %v2175, 1.0
        %v2184 = vadd.f32 %v2176, 1.0
        %v2185 = vmul.f32 %v2121, %v2177
        %v2186 = vmul.f32 %v2122, %v2178
        %v2187 = vmul.f32 %v2123, %v2179
        %v2188 = vmul.f32 %v2124, %v2180
        %v2189 = vmul.f32 %v2125, %v2181
        %v2190 = vmul.f32 %v2126, %v2182
        %v2191 = vmul.f32 %v2127, %v2183
        %v2192 = vmul.f32 %v2128, %v2184
        %v2193 = vpack.c.bf16 %v2189, %v2185
        %v2194 = vpack.c.bf16 %v2190, %v2186
        %v2195 = vpack.c.bf16 %v2191, %v2187
        %v2196 = vpack.c.bf16 %v2192, %v2188
        %v2197 = vld [vmem:[%s855] sm:$0xf]
        %v2198 = vld [vmem:[%s855 + $0x4] sm:$0xf]
        %v2199 = vld [vmem:[%s855 + $0x8] sm:$0xf]
        %v2200 = vld [vmem:[%s855 + $0xc] sm:$0xf]
        %v2201 = vld [vmem:[%s855 + $0x10] sm:$0xf]
        %v2202 = vld [vmem:[%s855 + $0x14] sm:$0xf]
        %v2203 = vld [vmem:[%s855 + $0x18] sm:$0xf]
        %v2204 = vld [vmem:[%s855 + $0x1c] sm:$0xf]
        %v2205 = vld [vmem:[%s855 + $0x20] sm:$0xf]
        %v2206 = vld [vmem:[%s855 + $0x24] sm:$0xf]
        %v2207 = vld [vmem:[%s855 + $0x28] sm:$0xf]
        %v2208 = vld [vmem:[%s855 + $0x2c] sm:$0xf]
        %v2209 = vld [vmem:[%s855 + $0x30] sm:$0xf]
        %v2210 = vld [vmem:[%s855 + $0x34] sm:$0xf]
        %v2211 = vld [vmem:[%s855 + $0x38] sm:$0xf]
        %v2212 = vld [vmem:[%s855 + $0x3c] sm:$0xf]
        %v2213 = vld [vmem:[%s855 + $0x40] sm:$0xf]
        %v2214 = vld [vmem:[%s855 + $0x44] sm:$0xf]
        %v2215 = vld [vmem:[%s855 + $0x48] sm:$0xf]
        %v2216 = vld [vmem:[%s855 + $0x4c] sm:$0xf]
        %v2217 = vld [vmem:[%s855 + $0x50] sm:$0xf]
        %v2218 = vld [vmem:[%s855 + $0x54] sm:$0xf]
        %v2219 = vld [vmem:[%s855 + $0x58] sm:$0xf]
        %v2220 = vld [vmem:[%s855 + $0x5c] sm:$0xf]
        %v2221 = vld [vmem:[%s855 + $0x60] sm:$0xf]
        %v2222 = vld [vmem:[%s855 + $0x64] sm:$0xf]
        %v2223 = vld [vmem:[%s855 + $0x68] sm:$0xf]
        %v2224 = vld [vmem:[%s855 + $0x6c] sm:$0xf]
        %v2225 = vld [vmem:[%s855 + $0x70] sm:$0xf]
        %v2226 = vld [vmem:[%s855 + $0x74] sm:$0xf]
        %v2227 = vld [vmem:[%s855 + $0x78] sm:$0xf]
        %v2228 = vld [vmem:[%s855 + $0x7c] sm:$0xf]
        %v2229 = vld [vmem:[%s855 + $0x80] sm:$0xf]
        %v2230 = vld [vmem:[%s855 + $0x84] sm:$0xf]
        %v2231 = vld [vmem:[%s855 + $0x88] sm:$0xf]
        %v2232 = vld [vmem:[%s855 + $0x8c] sm:$0xf]
        %v2233 = vld [vmem:[%s855 + $0x90] sm:$0xf]
        %v2234 = vld [vmem:[%s855 + $0x94] sm:$0xf]
        %v2235 = vld [vmem:[%s855 + $0x98] sm:$0xf]
        %v2236 = vld [vmem:[%s855 + $0x9c] sm:$0xf]
        %v2237 = vld [vmem:[%s855 + $0xa0] sm:$0xf]
        %v2238 = vld [vmem:[%s855 + $0xa4] sm:$0xf]
        %v2239 = vld [vmem:[%s855 + $0xa8] sm:$0xf]
        %v2240 = vld [vmem:[%s855 + $0xac] sm:$0xf]
        %v2241 = vld [vmem:[%s855 + $0xb0] sm:$0xf]
        %v2242 = vld [vmem:[%s855 + $0xb4] sm:$0xf]
        %v2243 = vld [vmem:[%s855 + $0xb8] sm:$0xf]
        %v2244 = vld [vmem:[%s855 + $0xbc] sm:$0xf]
        %v2245 = vld [vmem:[%s855 + $0xc0] sm:$0xf]
        %v2246 = vld [vmem:[%s855 + $0xc4] sm:$0xf]
        %v2247 = vld [vmem:[%s855 + $0xc8] sm:$0xf]
        %v2248 = vld [vmem:[%s855 + $0xcc] sm:$0xf]
        %v2249 = vld [vmem:[%s855 + $0xd0] sm:$0xf]
        %v2250 = vld [vmem:[%s855 + $0xd4] sm:$0xf]
        %v2251 = vld [vmem:[%s855 + $0xd8] sm:$0xf]
        %v2252 = vld [vmem:[%s855 + $0xdc] sm:$0xf]
        %v2253 = vld [vmem:[%s855 + $0xe0] sm:$0xf]
        %v2254 = vld [vmem:[%s855 + $0xe4] sm:$0xf]
        %v2255 = vld [vmem:[%s855 + $0xe8] sm:$0xf]
        %v2256 = vld [vmem:[%s855 + $0xec] sm:$0xf]
        %v2257 = vld [vmem:[%s855 + $0xf0] sm:$0xf]
        %v2258 = vld [vmem:[%s855 + $0xf4] sm:$0xf]
        %v2259 = vld [vmem:[%s855 + $0xf8] sm:$0xf]
        %v2260 = vld [vmem:[%s855 + $0xfc] sm:$0xf]
        %v2261 = vld [vmem:[%s986] sm:$0x1]
        %v2263 = vperm.slane %v2261, 0
        %v2329 = vunpack.c.l.b16 %v2197
        %v2330 = vunpack.c.l.b16 %v2198
        %v2331 = vunpack.c.l.b16 %v2199
        %v2332 = vunpack.c.l.b16 %v2200
        %v2333 = vunpack.c.l.b16 %v2201
        %v2334 = vunpack.c.l.b16 %v2202
        %v2335 = vunpack.c.l.b16 %v2203
        %v2336 = vunpack.c.l.b16 %v2204
        %v2337 = vunpack.c.l.b16 %v2205
        %v2338 = vunpack.c.l.b16 %v2206
        %v2339 = vunpack.c.l.b16 %v2207
        %v2340 = vunpack.c.l.b16 %v2208
        %v2341 = vunpack.c.l.b16 %v2209
        %v2342 = vunpack.c.l.b16 %v2210
        %v2343 = vunpack.c.l.b16 %v2211
        %v2344 = vunpack.c.l.b16 %v2212
        %v2345 = vunpack.c.l.b16 %v2213
        %v2346 = vunpack.c.l.b16 %v2214
        %v2347 = vunpack.c.l.b16 %v2215
        %v2348 = vunpack.c.l.b16 %v2216
        %v2349 = vunpack.c.l.b16 %v2217
        %v2350 = vunpack.c.l.b16 %v2218
        %v2351 = vunpack.c.l.b16 %v2219
        %v2352 = vunpack.c.l.b16 %v2220
        %v2353 = vunpack.c.l.b16 %v2221
        %v2354 = vunpack.c.l.b16 %v2222
        %v2355 = vunpack.c.l.b16 %v2223
        %v2356 = vunpack.c.l.b16 %v2224
        %v2357 = vunpack.c.l.b16 %v2225
        %v2358 = vunpack.c.l.b16 %v2226
        %v2359 = vunpack.c.l.b16 %v2227
        %v2360 = vunpack.c.l.b16 %v2228
        %v2361 = vunpack.c.l.b16 %v2229
        %v2362 = vunpack.c.l.b16 %v2230
        %v2363 = vunpack.c.l.b16 %v2231
        %v2364 = vunpack.c.l.b16 %v2232
        %v2365 = vunpack.c.l.b16 %v2233
        %v2366 = vunpack.c.l.b16 %v2234
        %v2367 = vunpack.c.l.b16 %v2235
        %v2368 = vunpack.c.l.b16 %v2236
        %v2369 = vunpack.c.l.b16 %v2237
        %v2370 = vunpack.c.l.b16 %v2238
        %v2371 = vunpack.c.l.b16 %v2239
        %v2372 = vunpack.c.l.b16 %v2240
        %v2373 = vunpack.c.l.b16 %v2241
        %v2374 = vunpack.c.l.b16 %v2242
        %v2375 = vunpack.c.l.b16 %v2243
        %v2376 = vunpack.c.l.b16 %v2244
        %v2377 = vunpack.c.l.b16 %v2245
        %v2378 = vunpack.c.l.b16 %v2246
        %v2379 = vunpack.c.l.b16 %v2247
        %v2380 = vunpack.c.l.b16 %v2248
        %v2381 = vunpack.c.l.b16 %v2249
        %v2382 = vunpack.c.l.b16 %v2250
        %v2383 = vunpack.c.l.b16 %v2251
        %v2384 = vunpack.c.l.b16 %v2252
        %v2385 = vunpack.c.l.b16 %v2253
        %v2386 = vunpack.c.l.b16 %v2254
        %v2387 = vunpack.c.l.b16 %v2255
        %v2388 = vunpack.c.l.b16 %v2256
        %v2389 = vunpack.c.l.b16 %v2257
        %v2390 = vunpack.c.l.b16 %v2258
        %v2391 = vunpack.c.l.b16 %v2259
        %v2392 = vunpack.c.l.b16 %v2260
        %v2393 = vpack.c.b16 %v2330, %v2329
        %v2394 = vpack.c.b16 %v2332, %v2331
        %v2395 = vpack.c.b16 %v2334, %v2333
        %v2396 = vpack.c.b16 %v2336, %v2335
        %v2397 = vpack.c.b16 %v2338, %v2337
        %v2398 = vpack.c.b16 %v2340, %v2339
        %v2399 = vpack.c.b16 %v2342, %v2341
        %v2400 = vpack.c.b16 %v2344, %v2343
        %v2401 = vpack.c.b16 %v2346, %v2345
        %v2402 = vpack.c.b16 %v2348, %v2347
        %v2403 = vpack.c.b16 %v2350, %v2349
        %v2404 = vpack.c.b16 %v2352, %v2351
        %v2405 = vpack.c.b16 %v2354, %v2353
        %v2406 = vpack.c.b16 %v2356, %v2355
        %v2407 = vpack.c.b16 %v2358, %v2357
        %v2408 = vpack.c.b16 %v2360, %v2359
        %v2409 = vpack.c.b16 %v2362, %v2361
        %v2410 = vpack.c.b16 %v2364, %v2363
        %v2411 = vpack.c.b16 %v2366, %v2365
        %v2412 = vpack.c.b16 %v2368, %v2367
        %v2413 = vpack.c.b16 %v2370, %v2369
        %v2414 = vpack.c.b16 %v2372, %v2371
        %v2415 = vpack.c.b16 %v2374, %v2373
        %v2416 = vpack.c.b16 %v2376, %v2375
        %v2417 = vpack.c.b16 %v2378, %v2377
        %v2418 = vpack.c.b16 %v2380, %v2379
        %v2419 = vpack.c.b16 %v2382, %v2381
        %v2420 = vpack.c.b16 %v2384, %v2383
        %v2421 = vpack.c.b16 %v2386, %v2385
        %v2422 = vpack.c.b16 %v2388, %v2387
        %v2423 = vpack.c.b16 %v2390, %v2389
        %v2424 = vpack.c.b16 %v2392, %v2391
        %2457 = vmatpush.bf16.msra.mxu0 %v2400
        %2458 = vmatpush.bf16.msra.mxu0 %v2399
        %2459 = vmatpush.bf16.msra.mxu0 %v2398
        %2460 = vmatpush.bf16.msra.mxu0 %v2397
        %2461 = vmatpush.bf16.msra.mxu0 %v2396
        %2462 = vmatpush.bf16.msra.mxu0 %v2395
        %2463 = vmatpush.bf16.msra.mxu0 %v2394
        %2464 = vmatpush.bf16.msra.mxu0 %v2393
        %2465 = vmatmul.bf16.gmra.mxu0 %v2193
        %v2466 = vpop.f32.mrf.mxu0
        %v2467 = vadd.f32 %v2263, %v2466
        %v2468 = vpop.f32.mrf.mxu0
        %v2469 = vadd.f32 %v2263, %v2468
        %2470 = vdwg.mxu0
        %2471 = vmatpush.bf16.msra.mxu0 %v2408
        %2472 = vmatpush.bf16.msra.mxu0 %v2407
        %2473 = vmatpush.bf16.msra.mxu0 %v2406
        %2474 = vmatpush.bf16.msra.mxu0 %v2405
        %2475 = vmatpush.bf16.msra.mxu0 %v2404
        %2476 = vmatpush.bf16.msra.mxu0 %v2403
        %2477 = vmatpush.bf16.msra.mxu0 %v2402
        %2478 = vmatpush.bf16.msra.mxu0 %v2401
        %2479 = vmatmul.bf16.gmra.mxu0 %v2194
        %v2480 = vpop.f32.mrf.mxu0
        %v2481 = vadd.f32 %v2467, %v2480
        %v2482 = vpop.f32.mrf.mxu0
        %v2483 = vadd.f32 %v2469, %v2482
        %2484 = vdwg.mxu0
        %2485 = vmatpush.bf16.msra.mxu0 %v2416
        %2486 = vmatpush.bf16.msra.mxu0 %v2415
        %2487 = vmatpush.bf16.msra.mxu0 %v2414
        %2488 = vmatpush.bf16.msra.mxu0 %v2413
        %2489 = vmatpush.bf16.msra.mxu0 %v2412
        %2490 = vmatpush.bf16.msra.mxu0 %v2411
        %2491 = vmatpush.bf16.msra.mxu0 %v2410
        %2492 = vmatpush.bf16.msra.mxu0 %v2409
        %2493 = vmatmul.bf16.gmra.mxu0 %v2195
        %v2494 = vpop.f32.mrf.mxu0
        %v2495 = vadd.f32 %v2481, %v2494
        %v2496 = vpop.f32.mrf.mxu0
        %v2497 = vadd.f32 %v2483, %v2496
        %2498 = vdwg.mxu0
        %2499 = vmatpush.bf16.msra.mxu0 %v2424
        %2500 = vmatpush.bf16.msra.mxu0 %v2423
        %2501 = vmatpush.bf16.msra.mxu0 %v2422
        %2502 = vmatpush.bf16.msra.mxu0 %v2421
        %2503 = vmatpush.bf16.msra.mxu0 %v2420
        %2504 = vmatpush.bf16.msra.mxu0 %v2419
        %2505 = vmatpush.bf16.msra.mxu0 %v2418
        %2506 = vmatpush.bf16.msra.mxu0 %v2417
        %2507 = vmatmul.bf16.gmra.mxu0 %v2196
        %v2508 = vpop.f32.mrf.mxu0
        %v2509 = vadd.f32 %v2495, %v2508
        %v2510 = vpop.f32.mrf.mxu0
        %v2511 = vadd.f32 %v2497, %v2510
        %2512 = vdwg.mxu0
        %v2513 = vadd.f32 %v1808, %v2509
        %v2514 = vadd.f32 %v1809, %v2511
        %2515 = vst [vmem:[%s963] sm:$0xff] %v2513
        %2516 = vst [vmem:[%s963 + $0x8] sm:$0xff] %v2514
        %p2517 = scmp.eq.s32.totalorder %s39, 1
        // Predicated region
        $region137: #{tpu_custom_call.1} parent=91 // pred_check
          %p2518 = pneg %p2517
        $region138: #{tpu_custom_call.1} parent=91 // pred_check_branch
          %2520 = sbr.rel (%p2518) target = $region140
        $region139: #{tpu_custom_call.1} parent=91 // pred_region
          %v2521 = vld [vmem:[%s963] sm:$0xff]
          %v2522 = vld [vmem:[%s963 + $0x8] sm:$0xff]
          %v2523 = vld [vmem:[%s16] sm:$0x1]
          %v2524 = vld [vmem:[%s17] sm:$0x1]
          %2525 = vadd.xlane.f32.xlu0 %v2521
          %v2526 = vpop.xlane.xlu0 %2525
          %2527 = vadd.xlane.f32.xlu0 %v2522
          %v2528 = vpop.xlane.xlu0 %2527
          %v2529 = vmul.f32 %v2526, %v1055
          %v2530 = vmul.f32 %v2528, %v1055
          %v2531 = vsub.f32 %v2521, %v2529
          %v2532 = vsub.f32 %v2522, %v2530
          %v2533 = vmul.f32 %v2531, %v2531
          %v2534 = vmul.f32 %v2532, %v2532
          %2535 = vadd.xlane.f32.xlu0 %v2533
          %v2536 = vpop.xlane.xlu0 %2535
          %2537 = vadd.xlane.f32.xlu0 %v2534
          %v2538 = vpop.xlane.xlu0 %2537
          %v2539 = vmul.f32 %v2536, %v1055
          %v2540 = vmul.f32 %v2538, %v1055
          %v2541 = vadd.f32 %v2539, 1e-05
          %v2542 = vadd.f32 %v2540, 1e-05
          %v2543 = vrsqrt.pop %v2541
          %v2544 = vmul.f32 %v2543, %v2541
          %v2545 = vmul.f32 %v2544, %v2543
          %v2546 = vmul.f32 0.5, %v2545
          %v2547 = vsub.f32 1.5, %v2546
          %v2548 = vmul.f32 %v2543, %v2547
          %vm2549 = vweird.f32 %v2541
          %vm2550 = vweird.f32 %v2543
          %vm2551 = vmor %vm2549, %vm2550
          %v2552 = vsel %vm2551, %v2543, %v2548
          %v2553 = vrsqrt.pop %v2542
          %v2554 = vmul.f32 %v2553, %v2542
          %v2555 = vmul.f32 %v2554, %v2553
          %v2556 = vmul.f32 0.5, %v2555
          %v2557 = vsub.f32 1.5, %v2556
          %v2558 = vmul.f32 %v2553, %v2557
          %vm2559 = vweird.f32 %v2542
          %vm2560 = vweird.f32 %v2553
          %vm2561 = vmor %vm2559, %vm2560
          %v2562 = vsel %vm2561, %v2553, %v2558
          %v2563 = vmul.f32 %v2531, %v2552
          %v2564 = vmul.f32 %v2532, %v2562
          %v2566 = vperm.slane %v2523, 0
          %v2568 = vmul.f32 %v2563, %v2566
          %v2569 = vmul.f32 %v2564, %v2566
          %v2571 = vperm.slane %v2524, 0
          %v2573 = vadd.f32 %v2568, %v2571
          %v2574 = vadd.f32 %v2569, %v2571
          %2575 = vst [vmem:[%s963] sm:$0xff] %v2573
          %2576 = vst [vmem:[%s963 + $0x8] sm:$0xff] %v2574
        $region140: #{tpu_custom_call.1} parent=91 // pred_fallthru
          _
        %s2577 = sand.u32 %s502, 1
        %s2578 = scalar_lea.sflag [#allocation4], %s2577
        %s2579 = sand.u32 %s502, 1
        %s2580 = smul.addr %s2579, 16
        %s2581 = scalar_lea.vmem [#allocation15], %s2580
        // Predicated region
        $region141: #{tpu_custom_call.1} parent=91 // pred_check
          %p2582 = pneg %p512
        $region142: #{tpu_custom_call.1} parent=91 // pred_check_branch
          %2584 = sbr.rel (%p2582) target = $region144
        $region143: #{tpu_custom_call.1} parent=91 // pred_region
          %2586 = vsyncadd %s2578, 0
          %s2587 = smul.addr %s38, 2
          %s2588 = smul.addr %s2587, 8
          %s2589 = scalar_lea.hbm %s18, %s2588
          %s2590 = sshll.u32 %s2581, 4
          %s2591 = int_to_ptr.vmem [resolvable:$true] %s2590
          %s2592 = sshll.u32 %s2589, 4
          %s2593 = int_to_ptr.hbm [resolvable:$true] %s2592
          %2598 = dma.vmem_to_hbm [thread:$0]  %s2591, 256, %s2593, %s2578, 128, 128, 8
        $region144: #{tpu_custom_call.1} parent=91 // pred_fallthru
          _
      $region92: #{tpu_custom_call.1} parent=5 // pred_fallthru
        _
      %p2599 = scmp.le.s32.totalorder 2, %s29
      // Predicated region
      $region145: #{tpu_custom_call.1} parent=5 // pred_check
        %p2600 = pneg %p2599
      $region146: #{tpu_custom_call.1} parent=5 // pred_check_branch
        %2602 = sbr.rel (%p2600) target = $region148
      $region147: #{tpu_custom_call.1} parent=5 // pred_region
        %s2603 = ssub.s32 %s29, 2
        // Predicated region
        $region149: #{tpu_custom_call.1} parent=147 // pred_check
          %p2604 = pneg %p518
        $region150: #{tpu_custom_call.1} parent=147 // pred_check_branch
          %2606 = sbr.rel (%p2604) target = $region152
        $region151: #{tpu_custom_call.1} parent=147 // pred_region
          %s2607 = sand.u32 %s503, 1
          %s2608 = scalar_lea.sflag [#allocation4], %s2607
          %s2609 = sand.u32 %s503, 1
          %s2610 = smul.addr %s2609, 16
          %s2611 = scalar_lea.vmem [#allocation15], %s2610
          %2613 = dma.done %s2608, 256
        $region152: #{tpu_custom_call.1} parent=147 // pred_fallthru
          _
      $region148: #{tpu_custom_call.1} parent=5 // pred_fallthru
        _
    $region6: #{tpu_custom_call.1} parent=1 // loop_footer
      %s33 = sadd.s32 1, %s29
    $region7: #{tpu_custom_call.1} parent=1 // loop_footer_branch
      %28 = sbr.rel target = $region3
    $region8: #{tpu_custom_call.1} parent=1 // loop_exit
      _
    %2614 = vsyncpa [#allocation3], 1
    %s2615 = scalar_lea.sflag [#allocation3], 1
    %2616 = vsyncpa %s2615, 1
    %2617 = vsyncpa [#allocation6], 1
    %2618 = vsyncpa [#allocation4], 1
    %s2619 = scalar_lea.sflag [#allocation4], 1
    %2620 = vsyncpa %s2619, 1

</llo_original>
